<compile_context>
chip_gen: v7x
topology: tpu7x:2x2x1
jax: 0.10.0
libtpu: 0.0.40
codegen_flags: <defaults>
</compile_context>

<pallas_src>
import functools
import inspect

import jax
import jax.numpy as jnp
from jax import lax
from jax.experimental import pallas as pl
from jax.experimental.pallas import tpu as pltpu


def _round_up(x: int, m: int) -> int:
    return ((x + m - 1) // m) * m


def _lane(n: int) -> int:   # physical lane footprint of a last dim in VMEM
    return _round_up(n, 128)


def _sub(n: int) -> int:    # physical sublane footprint of a 2nd-to-last dim
    return _round_up(n, 8)


# pipeline_mode / pl.Buffered is the documented way to single-buffer constant
# blocks; guard so older jax versions fall back to the (working) default.
try:
    _HAS_PIPELINE_MODE = (
        hasattr(pl, "Buffered")
        and "pipeline_mode" in inspect.signature(pl.BlockSpec).parameters
    )
except (TypeError, ValueError):
    _HAS_PIPELINE_MODE = hasattr(pl, "Buffered")


def _resident_spec(shape):
    """VMEM-resident (constant index_map) block; single-buffered when supported."""
    if _HAS_PIPELINE_MODE:
        return pl.BlockSpec(shape, lambda i: (0, 0), pipeline_mode=pl.Buffered(1))
    return pl.BlockSpec(shape, lambda i: (0, 0))


def _vmem_capacity_bytes() -> int:
    try:
        cap = getattr(pltpu.get_tpu_info(), "vmem_capacity_bytes", None)
        if cap:
            return int(cap)
    except Exception:
        pass
    return 64 * 1024 * 1024  # conservative: v7x per-TensorCore


def _regression_kernel(x_ref, w1_ref, b1_ref, w2_ref, b2_ref, o_ref, *, precision):
    # linear1 (f32 accumulation on the MXU)
    h = jnp.dot(x_ref[...], w1_ref[...],
                preferred_element_type=jnp.float32, precision=precision)
    h = h + b1_ref[...]                       # (1, hidden) broadcasts over rows
    # LeakyReLU(0.2): identical to where(h>=0, h, 0.2h) for alpha in (0,1)
    h = jnp.maximum(h, 0.2 * h)
    # TODO(synk): training-mode dropout (p=0.1) not implemented; inference identity.
    # linear2 (cast activations to the weight dtype -> fast single-pass bf16 MXU)
    y = jnp.dot(h.astype(w2_ref.dtype), w2_ref[...],
                preferred_element_type=jnp.float32, precision=precision)
    y = y + b2_ref[...]
    o_ref[...] = y.astype(o_ref.dtype)


def prepare_regression_params(w1, b1, w2, b2, compute_dtype=jnp.bfloat16):
    """One-time parameter prep (call once at load time, NOT per forward):
    casts weights to the compute dtype, biases to f32."""
    cdt = jnp.dtype(compute_dtype)
    return (w1.astype(cdt), b1.astype(jnp.float32),
            w2.astype(cdt), b2.astype(jnp.float32))


@functools.partial(jax.jit, static_argnames=("compute_dtype", "tm_max"))
def regression_forward(x, w1, b1, w2, b2, *, compute_dtype=jnp.bfloat16, tm_max=4096):
    """x: [B, T, in_dim] or [B, in_dim] (2-D gets unsqueeze(1), like torch).
       w1: [in_dim, hidden], b1: [hidden], w2: [hidden, out_dim], b2: [out_dim]
       (nn.Linear weights pre-transposed).  Returns [B, T, out_dim]."""
    if x.ndim == 2:
        x = x[:, None, :]                     # torch: x = x.unsqueeze(1)
    B, T, in_dim = x.shape
    hidden = w1.shape[1]
    out_dim = w2.shape[1]
    out_dtype = x.dtype

    M = B * T
    x2d = x.reshape(M, in_dim)

    # ---- compute dtype (bf16 streaming by default; f32 accumulation always) -
    cdt = jnp.dtype(compute_dtype) if compute_dtype is not None else jnp.dtype(x.dtype)
    if x2d.dtype != cdt:
        x2d = x2d.astype(cdt)
    if w1.dtype != cdt:
        w1 = w1.astype(cdt)
    if w2.dtype != cdt:
        w2 = w2.astype(cdt)
    # f32 path: pin precision so it doesn't silently lower to 1-pass bf16.
    precision = lax.Precision.HIGHEST if cdt == jnp.float32 else None

    # ---- output width: only lane-pad when inflation is modest (<= 1.5x) ----
    out_pad128 = _lane(out_dim)
    pad_out = (out_dim % 128 != 0) and (2 * out_pad128 <= 3 * out_dim)
    out_w = out_pad128 if pad_out else out_dim
    if pad_out:
        w2 = jnp.pad(w2, ((0, 0), (0, out_w - out_dim)))
        b2 = jnp.pad(b2.reshape(-1), (0, out_w - out_dim))
    b1_2d = b1.reshape(1, hidden).astype(jnp.float32)
    b2_2d = b2.reshape(1, out_w).astype(jnp.float32)

    # ---- row-tile selection from VMEM capacity (lane-padded footprints) ----
    isz = cdt.itemsize
    osz = jnp.dtype(out_dtype).itemsize
    vmem_cap = _vmem_capacity_bytes()
    wbuf = 1 if _HAS_PIPELINE_MODE else 2
    resident = wbuf * ((_sub(in_dim) * _lane(hidden) + _sub(hidden) * _lane(out_w)) * isz
                       + 8 * (_lane(hidden) + _lane(out_w)) * 4)        # weights + biases
    per_row = (2 * _lane(in_dim) * isz                                  # x (double-buffered)
               + 2 * _lane(out_w) * osz                                 # out (double-buffered)
               + (_lane(hidden) + _lane(out_w)) * 4)                    # f32 intermediates
    budget = max(int(0.55 * vmem_cap) - resident, 8 * per_row)
    TM = min(budget // per_row, tm_max)
    TM = max(8, (TM // 8) * 8)
    if TM >= M:
        # Whole problem fits in one tile: use the full extent unless it is big
        # enough to split across v7x's two TensorCores ("parallel" grid axis).
        TM = _round_up((M + 1) // 2, 8) if M >= 512 else M
    n_tiles = -(-M // TM)                       # ragged last block handled by Pallas

    vmem_need = TM * per_row + resident
    vmem_limit = min(max(int(1.3 * vmem_need) + (4 << 20), 16 << 20),
                     int(0.9 * vmem_cap))

    cost = pl.CostEstimate(
        flops=2 * M * (in_dim * hidden + hidden * out_dim),
        transcendentals=0,
        bytes_accessed=(M * in_dim * isz
                        + (in_dim * hidden + hidden * out_w) * isz
                        + (hidden + out_w) * 4
                        + M * out_w * osz),
    )

    kernel = functools.partial(_regression_kernel, precision=precision)

    out2d = pl.pallas_call(
        kernel,
        out_shape=jax.ShapeDtypeStruct((M, out_w), out_dtype),
        grid_spec=pltpu.PrefetchScalarGridSpec(
            num_scalar_prefetch=0,
            grid=(n_tiles,),
            in_specs=[
                pl.BlockSpec((TM, in_dim), lambda i: (i, 0)),   # streamed rows of x
                _resident_spec((in_dim, hidden)),               # W1 (VMEM-resident)
                _resident_spec((1, hidden)),                    # b1
                _resident_spec((hidden, out_w)),                # W2
                _resident_spec((1, out_w)),                     # b2
            ],
            out_specs=pl.BlockSpec((TM, out_w), lambda i: (i, 0)),
        ),
        compiler_params=pltpu.CompilerParams(
            dimension_semantics=("parallel",),   # independent row tiles -> megacore
            vmem_limit_bytes=vmem_limit,
        ),
        cost_estimate=cost,
    )(x2d, w1, b1_2d, w2, b2_2d)

    if pad_out:
        out2d = out2d[:, :out_dim]
    return out2d.reshape(B, T, out_dim)


def _reference(x, w1, b1, w2, b2):
    if x.ndim == 2:
        x = x[:, None, :]
    h = jnp.einsum("btk,kh->bth", x, w1) + b1
    h = jnp.where(h >= 0, h, 0.2 * h)
    return jnp.einsum("bth,ho->bto", h, w2) + b2


if __name__ == "__main__":
    key = jax.random.PRNGKey(0)
    B, T, in_dim, hidden, out_dim = 2, 8, 32, 256, 16

    k_x, k_w1, k_b1, k_w2, k_b2 = jax.random.split(key, 5)
    x = jax.random.normal(k_x, (B, T, in_dim), dtype=jnp.float32)

    # Deterministic synthetic params (nn.Linear(in,hidden), nn.Linear(hidden,out)),
    # stored pre-transposed (W^T layout) for the kernel.
    bound1 = 1.0 / (in_dim ** 0.5)
    w1 = jax.random.uniform(k_w1, (in_dim, hidden), jnp.float32, -bound1, bound1)
    b1 = jax.random.uniform(k_b1, (hidden,), jnp.float32, -bound1, bound1)
    bound2 = 1.0 / (hidden ** 0.5)
    w2 = jax.random.uniform(k_w2, (hidden, out_dim), jnp.float32, -bound2, bound2)
    b2 = jax.random.uniform(k_b2, (out_dim,), jnp.float32, -bound2, bound2)

    y_ref = _reference(x, w1, b1, w2, b2)

    # Exact-precision path (f32 streaming, HIGHEST MXU precision) — matches the
    # PyTorch module's inference forward.
    y_f32 = regression_forward(x, w1, b1, w2, b2, compute_dtype=jnp.float32)
    jax.block_until_ready(y_f32)
    assert y_f32.shape == (B, T, out_dim)
    assert jnp.allclose(y_f32, y_ref, atol=1e-5, rtol=1e-5), "f32 mismatch vs reference"

    # Default serving path: bf16 streaming, f32 MXU accumulation, weights
    # pre-cast once (outside the per-call jitted path).
    w1c, b1c, w2c, b2c = prepare_regression_params(w1, b1, w2, b2, jnp.bfloat16)
    y_bf16 = regression_forward(x, w1c, b1c, w2c, b2c)
    jax.block_until_ready(y_bf16)
    assert y_bf16.shape == (B, T, out_dim)
    assert jnp.allclose(y_bf16, y_ref, atol=5e-2, rtol=5e-2), "bf16 mismatch vs reference"

    # 2-D input path (torch unsqueeze(1) behaviour)
    y2 = regression_forward(x[:, 0, :], w1, b1, w2, b2, compute_dtype=jnp.float32)
    jax.block_until_ready(y2)
    assert y2.shape == (B, 1, out_dim)
    assert jnp.allclose(y2[:, 0, :], y_ref[:, 0, :], atol=1e-5, rtol=1e-5)

    print("KERNEL_OK")
</pallas_src>

<mosaic_0001>
module attributes {stable_mosaic.version = 11 : i64} {
  func.func @_regression_kernel(%arg0: i32, %arg1: memref<16x32xf32, #tpu.memory_space<vmem>>, %arg2: memref<32x256xf32, #tpu.memory_space<vmem>>, %arg3: memref<1x256xf32, #tpu.memory_space<vmem>>, %arg4: memref<256x16xf32, #tpu.memory_space<vmem>>, %arg5: memref<1x16xf32, #tpu.memory_space<vmem>>, %arg6: memref<16x16xf32, #tpu.memory_space<vmem>>) attributes {dimension_semantics = [#tpu.dimension_semantics<parallel>], iteration_bounds = array<i64: 1>, scalar_prefetch = 0 : i64, scratch_operands = 0 : i64, tpu.core_type = #tpu.core_type<tc>, window_params = [{transform_indices = @transform_0, window_bounds = array<i64: 16, 32>}, {pipeline_mode = #tpu.pipeline_mode<synchronous>, transform_indices = @transform_1, window_bounds = array<i64: 32, 256>}, {pipeline_mode = #tpu.pipeline_mode<synchronous>, transform_indices = @transform_2, window_bounds = array<i64: 1, 256>}, {pipeline_mode = #tpu.pipeline_mode<synchronous>, transform_indices = @transform_3, window_bounds = array<i64: 256, 16>}, {pipeline_mode = #tpu.pipeline_mode<synchronous>, transform_indices = @transform_4, window_bounds = array<i64: 1, 16>}, {transform_indices = @transform_5, window_bounds = array<i64: 16, 16>}]} {
    %c0 = arith.constant 0 : index
    %c0_0 = arith.constant 0 : index
    %0 = vector.load %arg1[%c0, %c0_0] : memref<16x32xf32, #tpu.memory_space<vmem>>, vector<16x32xf32>
    %c0_1 = arith.constant 0 : index
    %c0_2 = arith.constant 0 : index
    %1 = vector.load %arg2[%c0_1, %c0_2] : memref<32x256xf32, #tpu.memory_space<vmem>>, vector<32x256xf32>
    %cst = arith.constant dense<0.000000e+00> : vector<16x256xf32>
    %2 = tpu.matmul %0, %1, %cst {dimension_numbers = #tpu.dot_dimension_numbers<[1], [0], [0], [1], [0, 0, 1, 1], [], []>, precision = #tpu.contract_precision<fp32>} : vector<16x32xf32>, vector<32x256xf32>, vector<16x256xf32> -> vector<16x256xf32>
    %c0_3 = arith.constant 0 : index
    %c0_4 = arith.constant 0 : index
    %3 = vector.load %arg3[%c0_3, %c0_4] : memref<1x256xf32, #tpu.memory_space<vmem>>, vector<1x256xf32>
    %4 = vector.broadcast %3 : vector<1x256xf32> to vector<16x256xf32>
    %5 = arith.addf %2, %4 : vector<16x256xf32>
    %cst_5 = arith.constant 2.000000e-01 : f32
    %6 = vector.broadcast %cst_5 : f32 to vector<16x256xf32>
    %7 = arith.mulf %6, %5 : vector<16x256xf32>
    %8 = arith.maximumf %5, %7 : vector<16x256xf32>
    %c0_6 = arith.constant 0 : index
    %c0_7 = arith.constant 0 : index
    %9 = vector.load %arg4[%c0_6, %c0_7] : memref<256x16xf32, #tpu.memory_space<vmem>>, vector<256x16xf32>
    %cst_8 = arith.constant dense<0.000000e+00> : vector<16x16xf32>
    %10 = tpu.matmul %8, %9, %cst_8 {dimension_numbers = #tpu.dot_dimension_numbers<[1], [0], [0], [1], [0, 0, 1, 1], [], []>, precision = #tpu.contract_precision<fp32>} : vector<16x256xf32>, vector<256x16xf32>, vector<16x16xf32> -> vector<16x16xf32>
    %c0_9 = arith.constant 0 : index
    %c0_10 = arith.constant 0 : index
    %11 = vector.load %arg5[%c0_9, %c0_10] : memref<1x16xf32, #tpu.memory_space<vmem>>, vector<1x16xf32>
    %12 = vector.broadcast %11 : vector<1x16xf32> to vector<16x16xf32>
    %13 = arith.addf %10, %12 : vector<16x16xf32>
    %c0_11 = arith.constant 0 : index
    %c0_12 = arith.constant 0 : index
    %14 = vector.load %arg6[%c0_11, %c0_12] : memref<16x16xf32, #tpu.memory_space<vmem>>, vector<16x16xf32>
    tpu.vector_store %arg6[%c0_11, %c0_12], %13 {strides = array<i32>} : memref<16x16xf32, #tpu.memory_space<vmem>>, vector<16x16xf32>,
    return
  }
  func.func @transform_0(%arg0: i32) -> (i32, i32) {
    %c0_i32 = arith.constant 0 : i32
    %c0_i32_0 = arith.constant 0 : i32
    return %arg0, %c0_i32 : i32, i32
  }
  func.func @transform_1(%arg0: i32) -> (i32, i32) {
    %c0_i32 = arith.constant 0 : i32
    %c0_i32_0 = arith.constant 0 : i32
    %c0_i32_1 = arith.constant 0 : i32
    return %c0_i32, %c0_i32_0 : i32, i32
  }
  func.func @transform_2(%arg0: i32) -> (i32, i32) {
    %c0_i32 = arith.constant 0 : i32
    %c0_i32_0 = arith.constant 0 : i32
    %c0_i32_1 = arith.constant 0 : i32
    return %c0_i32, %c0_i32_0 : i32, i32
  }
  func.func @transform_3(%arg0: i32) -> (i32, i32) {
    %c0_i32 = arith.constant 0 : i32
    %c0_i32_0 = arith.constant 0 : i32
    %c0_i32_1 = arith.constant 0 : i32
    return %c0_i32, %c0_i32_0 : i32, i32
  }
  func.func @transform_4(%arg0: i32) -> (i32, i32) {
    %c0_i32 = arith.constant 0 : i32
    %c0_i32_0 = arith.constant 0 : i32
    %c0_i32_1 = arith.constant 0 : i32
    return %c0_i32, %c0_i32_0 : i32, i32
  }
  func.func @transform_5(%arg0: i32) -> (i32, i32) {
    %c0_i32 = arith.constant 0 : i32
    %c0_i32_0 = arith.constant 0 : i32
    return %arg0, %c0_i32 : i32, i32
  }
}

</mosaic_0001>

<llo_original>
// kernel: regression_forward.1
$region0: #{regression_forward.1}
  #allocation0 [shape = 'u32[]', space=smem, size = 0x4, offset = 0x4, fixed_abs, tag = 'smem constant byte address 0x4 - core index']
  #allocation1 [shape = 'u32[144,128]{1,0:T(1,128)}', space=vmem, size = 0x12000, scoped, tag = 'internal scratch']
  %s0 = inlined_call_operand.vmem [shape: f32[16,32], index: 0, kind: input, shape index: {}]
  %s1 = inlined_call_operand.vmem [shape: f32[32,256], index: 1, kind: input, shape index: {}]
  %s2 = inlined_call_operand.vmem [shape: f32[1,256], index: 2, kind: input, shape index: {}]
  %s3 = inlined_call_operand.vmem [shape: f32[256,16], index: 3, kind: input, shape index: {}]
  %s4 = inlined_call_operand.vmem [shape: f32[1,16], index: 4, kind: input, shape index: {}]
  %s5 = inlined_call_operand.hbm [shape: f32[16,16], index: 5, kind: output, shape index: {}]
  %s6 = sld [smem:[#allocation0]]
  $region30: #{regression_forward.1} parent=0
    _
  %s8 = ssub.s32 1, %s6
  %s9 = scalar_select 0, %s8, %s6
  $region1: #{regression_forward.1} parent=0
    #allocation2 [shape = 'u8[8192]{0}', space=vmem, size = 0x2000, scoped, tag = 'output window, operand 0, single buffered']
    #allocation3 [shape = 's32[1]{0}', space=sflag, size = 0x4, scoped, tag = 'scoped memory for regression_forward.1']
    %10 = vsyncpa [#allocation3], 0
    // Predicated region
    $region2: #{regression_forward.1} parent=1 // pred_check
      _
    $region3: #{regression_forward.1} parent=1 // pred_check_branch
      %12 = sbr.rel (0) target = $region5
    $region4: #{regression_forward.1} parent=1 // pred_region
      _
    $region5: #{regression_forward.1} parent=1 // pred_fallthru
      _
    // Predicated region
    $region6: #{regression_forward.1} parent=1 // pred_check
      _
    $region7: #{regression_forward.1} parent=1 // pred_check_branch
      %14 = sbr.rel (0) target = $region9
    $region8: #{regression_forward.1} parent=1 // pred_region
      _
    $region9: #{regression_forward.1} parent=1 // pred_fallthru
      _
    // Predicated region
    $region10: #{regression_forward.1} parent=1 // pred_check
      _
    $region11: #{regression_forward.1} parent=1 // pred_check_branch
      %16 = sbr.rel (0) target = $region13
    $region12: #{regression_forward.1} parent=1 // pred_region
      _
    $region13: #{regression_forward.1} parent=1 // pred_fallthru
      _
    // Predicated region
    $region14: #{regression_forward.1} parent=1 // pred_check
      _
    $region15: #{regression_forward.1} parent=1 // pred_check_branch
      %18 = sbr.rel (0) target = $region17
    $region16: #{regression_forward.1} parent=1 // pred_region
      _
    $region17: #{regression_forward.1} parent=1 // pred_fallthru
      _
    // Predicated region
    $region18: #{regression_forward.1} parent=1 // pred_check
      _
    $region19: #{regression_forward.1} parent=1 // pred_check_branch
      %20 = sbr.rel (0) target = $region21
    $region20: #{regression_forward.1} parent=1 // pred_region
      _
    $region21: #{regression_forward.1} parent=1 // pred_fallthru
      _
    %v21 = vld [vmem:[%s0] sm:$0xff]
    %v22 = vld [vmem:[%s0 + $0x8] sm:$0xff]
    %v23 = vld [vmem:[%s1] sm:$0xff]
    %v24 = vld [vmem:[%s1 + $0x8] sm:$0xff]
    %v25 = vld [vmem:[%s1 + $0x10] sm:$0xff]
    %v26 = vld [vmem:[%s1 + $0x18] sm:$0xff]
    %v27 = vld [vmem:[%s1 + $0x20] sm:$0xff]
    %v28 = vld [vmem:[%s1 + $0x28] sm:$0xff]
    %v29 = vld [vmem:[%s1 + $0x30] sm:$0xff]
    %v30 = vld [vmem:[%s1 + $0x38] sm:$0xff]
    %v31 = vld [vmem:[%s2] sm:$0x3]
    %v33 = vlaneseq
    %v34 = vshrl.u32 %v33, 7
    %v35 = vsub.s32 0, %v34
    %v36 = vrot.slane %v31, %v35
    %v37 = vlaneseq
    %v38 = vshrl.u32 %v37, 7
    %v39 = vsub.s32 1, %v38
    %v40 = vrot.slane %v31, %v39
    %vm43 = vcmask 261120
    %v45 = vsel %vm43, %v21, 0
    %v48 = vsel %vm43, %v22, 0
    %v50 = vand.u32 %v24, 4294901760
    %51 = vmatprep.subr.mxu0 %v50
    %v52 = vand.u32 %v23, 4294901760
    %53 = vmatpush1.msra.mxu0 %v52
    %v54 = vand.u32 %v26, 4294901760
    %55 = vmatprep.subr.mxu0 %v54
    %v56 = vand.u32 %v25, 4294901760
    %57 = vmatpush1.msra.mxu0 %v56
    %v58 = vand.u32 %v28, 4294901760
    %59 = vmatprep.subr.mxu0 %v58
    %v60 = vand.u32 %v27, 4294901760
    %61 = vmatpush1.msra.mxu0 %v60
    %v62 = vand.u32 %v30, 4294901760
    %63 = vmatprep.subr.mxu0 %v62
    %v64 = vand.u32 %v29, 4294901760
    %65 = vmatpush1.msra.mxu0 %v64
    %66 = vmatprep.subr.mxu0 0.0
    %67 = vmatpush1.msra.mxu0 0.0
    %68 = vmatprep.subr.mxu0 0.0
    %69 = vmatpush1.msra.mxu0 0.0
    %70 = vmatprep.subr.mxu0 0.0
    %71 = vmatpush1.msra.mxu0 0.0
    %72 = vmatprep.subr.mxu0 0.0
    %73 = vmatpush1.msra.mxu0 0.0
    %74 = vmatprep.subr.mxu0 0.0
    %75 = vmatpush1.msra.mxu0 0.0
    %76 = vmatprep.subr.mxu0 0.0
    %77 = vmatpush1.msra.mxu0 0.0
    %78 = vmatprep.subr.mxu0 0.0
    %79 = vmatpush1.msra.mxu0 0.0
    %80 = vmatprep.subr.mxu0 0.0
    %81 = vmatpush1.msra.mxu0 0.0
    %82 = vmatprep.subr.mxu0 0.0
    %83 = vmatpush1.msra.mxu0 0.0
    %84 = vmatprep.subr.mxu0 0.0
    %85 = vmatpush1.msra.mxu0 0.0
    %86 = vmatprep.subr.mxu0 0.0
    %87 = vmatpush1.msra.mxu0 0.0
    %88 = vmatprep.subr.mxu0 0.0
    %89 = vmatpush1.msra.mxu0 0.0
    %90 = vmatprep.subr.mxu0 0.0
    %91 = vmatpush1.msra.mxu0 0.0
    %92 = vmatprep.subr.mxu0 0.0
    %93 = vmatpush1.msra.mxu0 0.0
    %94 = vmatprep.subr.mxu0 0.0
    %95 = vmatpush1.msra.mxu0 0.0
    %96 = vmatprep.subr.mxu0 0.0
    %97 = vmatpush1.msra.mxu0 0.0
    %98 = vmatprep.subr.mxu0 0.0
    %99 = vmatpush1.msra.mxu0 0.0
    %100 = vmatprep.subr.mxu0 0.0
    %101 = vmatpush1.msra.mxu0 0.0
    %102 = vmatprep.subr.mxu0 0.0
    %103 = vmatpush1.msra.mxu0 0.0
    %104 = vmatprep.subr.mxu0 0.0
    %105 = vmatpush1.msra.mxu0 0.0
    %106 = vmatprep.subr.mxu0 0.0
    %107 = vmatpush1.msra.mxu0 0.0
    %108 = vmatprep.subr.mxu0 0.0
    %109 = vmatpush1.msra.mxu0 0.0
    %110 = vmatprep.subr.mxu0 0.0
    %111 = vmatpush1.msra.mxu0 0.0
    %112 = vmatprep.subr.mxu0 0.0
    %113 = vmatpush1.msra.mxu0 0.0
    %114 = vmatprep.subr.mxu0 0.0
    %115 = vmatpush1.msra.mxu0 0.0
    %116 = vmatprep.subr.mxu0 0.0
    %117 = vmatpush1.msra.mxu0 0.0
    %118 = vmatprep.subr.mxu0 0.0
    %119 = vmatpush1.msra.mxu0 0.0
    %120 = vmatprep.subr.mxu0 0.0
    %121 = vmatpush1.msra.mxu0 0.0
    %122 = vmatprep.mubr.f32.mxu0 0.0
    %v123 = vand.u32 %v45, 4294901760
    %v124 = vsub.f32 %v45, %v123
    %v125 = vand.u32 %v124, 4294901760
    %v126 = vsub.f32 %v124, %v125
    %v127 = vand.u32 %v126, 4294901760
    %128 = vmatmul.mubr.f32.gmra.mrb[0].mxu0 %v127
    %v129 = vpop.f32.mrb[0].mxu0
    %v130 = vadd.f32 %v36, %v129
    %v131 = vpop.f32.mrb[0].mxu0
    %v132 = vadd.f32 %v40, %v131
    %133 = vmatprep.mubr.f32.mxu0 0.0
    %v134 = vand.u32 %v48, 4294901760
    %v135 = vsub.f32 %v48, %v134
    %v136 = vand.u32 %v135, 4294901760
    %v137 = vsub.f32 %v135, %v136
    %v138 = vand.u32 %v137, 4294901760
    %139 = vmatmul.mubr.f32.gmra.mrb[0].mxu0 %v138
    %v140 = vpop.f32.mrb[0].mxu0
    %v141 = vadd.f32 %v36, %v140
    %v142 = vpop.f32.mrb[0].mxu0
    %v143 = vadd.f32 %v40, %v142
    %144 = vdwg.mxu0
    %v145 = vand.u32 %v24, 4294901760
    %v146 = vsub.f32 %v24, %v145
    %v147 = vand.u32 %v146, 4294901760
    %v148 = vsub.f32 %v146, %v147
    %v149 = vand.u32 %v148, 4294901760
    %150 = vmatprep.subr.mxu0 %v149
    %v151 = vand.u32 %v23, 4294901760
    %v152 = vsub.f32 %v23, %v151
    %v153 = vand.u32 %v152, 4294901760
    %v154 = vsub.f32 %v152, %v153
    %v155 = vand.u32 %v154, 4294901760
    %156 = vmatpush1.msra.mxu0 %v155
    %v157 = vand.u32 %v26, 4294901760
    %v158 = vsub.f32 %v26, %v157
    %v159 = vand.u32 %v158, 4294901760
    %v160 = vsub.f32 %v158, %v159
    %v161 = vand.u32 %v160, 4294901760
    %162 = vmatprep.subr.mxu0 %v161
    %v163 = vand.u32 %v25, 4294901760
    %v164 = vsub.f32 %v25, %v163
    %v165 = vand.u32 %v164, 4294901760
    %v166 = vsub.f32 %v164, %v165
    %v167 = vand.u32 %v166, 4294901760
    %168 = vmatpush1.msra.mxu0 %v167
    %v169 = vand.u32 %v28, 4294901760
    %v170 = vsub.f32 %v28, %v169
    %v171 = vand.u32 %v170, 4294901760
    %v172 = vsub.f32 %v170, %v171
    %v173 = vand.u32 %v172, 4294901760
    %174 = vmatprep.subr.mxu0 %v173
    %v175 = vand.u32 %v27, 4294901760
    %v176 = vsub.f32 %v27, %v175
    %v177 = vand.u32 %v176, 4294901760
    %v178 = vsub.f32 %v176, %v177
    %v179 = vand.u32 %v178, 4294901760
    %180 = vmatpush1.msra.mxu0 %v179
    %v181 = vand.u32 %v30, 4294901760
    %v182 = vsub.f32 %v30, %v181
    %v183 = vand.u32 %v182, 4294901760
    %v184 = vsub.f32 %v182, %v183
    %v185 = vand.u32 %v184, 4294901760
    %186 = vmatprep.subr.mxu0 %v185
    %v187 = vand.u32 %v29, 4294901760
    %v188 = vsub.f32 %v29, %v187
    %v189 = vand.u32 %v188, 4294901760
    %v190 = vsub.f32 %v188, %v189
    %v191 = vand.u32 %v190, 4294901760
    %192 = vmatpush1.msra.mxu0 %v191
    %193 = vmatprep.subr.mxu0 0.0
    %194 = vmatpush1.msra.mxu0 0.0
    %195 = vmatprep.subr.mxu0 0.0
    %196 = vmatpush1.msra.mxu0 0.0
    %197 = vmatprep.subr.mxu0 0.0
    %198 = vmatpush1.msra.mxu0 0.0
    %199 = vmatprep.subr.mxu0 0.0
    %200 = vmatpush1.msra.mxu0 0.0
    %201 = vmatprep.subr.mxu0 0.0
    %202 = vmatpush1.msra.mxu0 0.0
    %203 = vmatprep.subr.mxu0 0.0
    %204 = vmatpush1.msra.mxu0 0.0
    %205 = vmatprep.subr.mxu0 0.0
    %206 = vmatpush1.msra.mxu0 0.0
    %207 = vmatprep.subr.mxu0 0.0
    %208 = vmatpush1.msra.mxu0 0.0
    %209 = vmatprep.subr.mxu0 0.0
    %210 = vmatpush1.msra.mxu0 0.0
    %211 = vmatprep.subr.mxu0 0.0
    %212 = vmatpush1.msra.mxu0 0.0
    %213 = vmatprep.subr.mxu0 0.0
    %214 = vmatpush1.msra.mxu0 0.0
    %215 = vmatprep.subr.mxu0 0.0
    %216 = vmatpush1.msra.mxu0 0.0
    %217 = vmatprep.subr.mxu0 0.0
    %218 = vmatpush1.msra.mxu0 0.0
    %219 = vmatprep.subr.mxu0 0.0
    %220 = vmatpush1.msra.mxu0 0.0
    %221 = vmatprep.subr.mxu0 0.0
    %222 = vmatpush1.msra.mxu0 0.0
    %223 = vmatprep.subr.mxu0 0.0
    %224 = vmatpush1.msra.mxu0 0.0
    %225 = vmatprep.subr.mxu0 0.0
    %226 = vmatpush1.msra.mxu0 0.0
    %227 = vmatprep.subr.mxu0 0.0
    %228 = vmatpush1.msra.mxu0 0.0
    %229 = vmatprep.subr.mxu0 0.0
    %230 = vmatpush1.msra.mxu0 0.0
    %231 = vmatprep.subr.mxu0 0.0
    %232 = vmatpush1.msra.mxu0 0.0
    %233 = vmatprep.subr.mxu0 0.0
    %234 = vmatpush1.msra.mxu0 0.0
    %235 = vmatprep.subr.mxu0 0.0
    %236 = vmatpush1.msra.mxu0 0.0
    %237 = vmatprep.subr.mxu0 0.0
    %238 = vmatpush1.msra.mxu0 0.0
    %239 = vmatprep.subr.mxu0 0.0
    %240 = vmatpush1.msra.mxu0 0.0
    %241 = vmatprep.subr.mxu0 0.0
    %242 = vmatpush1.msra.mxu0 0.0
    %243 = vmatprep.subr.mxu0 0.0
    %244 = vmatpush1.msra.mxu0 0.0
    %245 = vmatprep.subr.mxu0 0.0
    %246 = vmatpush1.msra.mxu0 0.0
    %247 = vmatprep.subr.mxu0 0.0
    %248 = vmatpush1.msra.mxu0 0.0
    %249 = vmatprep.mubr.f32.mxu0 0.0
    %v250 = vand.u32 %v45, 4294901760
    %251 = vmatmul.mubr.f32.gmra.mrb[0].mxu0 %v250
    %v252 = vpop.f32.mrb[0].mxu0
    %v253 = vadd.f32 %v130, %v252
    %v254 = vpop.f32.mrb[0].mxu0
    %v255 = vadd.f32 %v132, %v254
    %256 = vmatprep.mubr.f32.mxu0 0.0
    %v257 = vand.u32 %v48, 4294901760
    %258 = vmatmul.mubr.f32.gmra.mrb[0].mxu0 %v257
    %v259 = vpop.f32.mrb[0].mxu0
    %v260 = vadd.f32 %v141, %v259
    %v261 = vpop.f32.mrb[0].mxu0
    %v262 = vadd.f32 %v143, %v261
    %263 = vdwg.mxu0
    %v264 = vand.u32 %v24, 4294901760
    %v265 = vsub.f32 %v24, %v264
    %266 = vmatprep.subr.mxu0 %v265
    %v267 = vand.u32 %v23, 4294901760
    %v268 = vsub.f32 %v23, %v267
    %269 = vmatpush1.msra.mxu0 %v268
    %v270 = vand.u32 %v26, 4294901760
    %v271 = vsub.f32 %v26, %v270
    %272 = vmatprep.subr.mxu0 %v271
    %v273 = vand.u32 %v25, 4294901760
    %v274 = vsub.f32 %v25, %v273
    %275 = vmatpush1.msra.mxu0 %v274
    %v276 = vand.u32 %v28, 4294901760
    %v277 = vsub.f32 %v28, %v276
    %278 = vmatprep.subr.mxu0 %v277
    %v279 = vand.u32 %v27, 4294901760
    %v280 = vsub.f32 %v27, %v279
    %281 = vmatpush1.msra.mxu0 %v280
    %v282 = vand.u32 %v30, 4294901760
    %v283 = vsub.f32 %v30, %v282
    %284 = vmatprep.subr.mxu0 %v283
    %v285 = vand.u32 %v29, 4294901760
    %v286 = vsub.f32 %v29, %v285
    %287 = vmatpush1.msra.mxu0 %v286
    %288 = vmatprep.subr.mxu0 0.0
    %289 = vmatpush1.msra.mxu0 0.0
    %290 = vmatprep.subr.mxu0 0.0
    %291 = vmatpush1.msra.mxu0 0.0
    %292 = vmatprep.subr.mxu0 0.0
    %293 = vmatpush1.msra.mxu0 0.0
    %294 = vmatprep.subr.mxu0 0.0
    %295 = vmatpush1.msra.mxu0 0.0
    %296 = vmatprep.subr.mxu0 0.0
    %297 = vmatpush1.msra.mxu0 0.0
    %298 = vmatprep.subr.mxu0 0.0
    %299 = vmatpush1.msra.mxu0 0.0
    %300 = vmatprep.subr.mxu0 0.0
    %301 = vmatpush1.msra.mxu0 0.0
    %302 = vmatprep.subr.mxu0 0.0
    %303 = vmatpush1.msra.mxu0 0.0
    %304 = vmatprep.subr.mxu0 0.0
    %305 = vmatpush1.msra.mxu0 0.0
    %306 = vmatprep.subr.mxu0 0.0
    %307 = vmatpush1.msra.mxu0 0.0
    %308 = vmatprep.subr.mxu0 0.0
    %309 = vmatpush1.msra.mxu0 0.0
    %310 = vmatprep.subr.mxu0 0.0
    %311 = vmatpush1.msra.mxu0 0.0
    %312 = vmatprep.subr.mxu0 0.0
    %313 = vmatpush1.msra.mxu0 0.0
    %314 = vmatprep.subr.mxu0 0.0
    %315 = vmatpush1.msra.mxu0 0.0
    %316 = vmatprep.subr.mxu0 0.0
    %317 = vmatpush1.msra.mxu0 0.0
    %318 = vmatprep.subr.mxu0 0.0
    %319 = vmatpush1.msra.mxu0 0.0
    %320 = vmatprep.subr.mxu0 0.0
    %321 = vmatpush1.msra.mxu0 0.0
    %322 = vmatprep.subr.mxu0 0.0
    %323 = vmatpush1.msra.mxu0 0.0
    %324 = vmatprep.subr.mxu0 0.0
    %325 = vmatpush1.msra.mxu0 0.0
    %326 = vmatprep.subr.mxu0 0.0
    %327 = vmatpush1.msra.mxu0 0.0
    %328 = vmatprep.subr.mxu0 0.0
    %329 = vmatpush1.msra.mxu0 0.0
    %330 = vmatprep.subr.mxu0 0.0
    %331 = vmatpush1.msra.mxu0 0.0
    %332 = vmatprep.subr.mxu0 0.0
    %333 = vmatpush1.msra.mxu0 0.0
    %334 = vmatprep.subr.mxu0 0.0
    %335 = vmatpush1.msra.mxu0 0.0
    %336 = vmatprep.subr.mxu0 0.0
    %337 = vmatpush1.msra.mxu0 0.0
    %338 = vmatprep.subr.mxu0 0.0
    %339 = vmatpush1.msra.mxu0 0.0
    %340 = vmatprep.subr.mxu0 0.0
    %341 = vmatpush1.msra.mxu0 0.0
    %342 = vmatprep.subr.mxu0 0.0
    %343 = vmatpush1.msra.mxu0 0.0
    %344 = vmatprep.mubr.f32.mxu0 0.0
    %v345 = vand.u32 %v45, 4294901760
    %v346 = vsub.f32 %v45, %v345
    %347 = vmatmul.mubr.f32.gmra.mrb[0].mxu0 %v346
    %v348 = vpop.f32.mrb[0].mxu0
    %v349 = vadd.f32 %v253, %v348
    %v350 = vpop.f32.mrb[0].mxu0
    %v351 = vadd.f32 %v255, %v350
    %352 = vmatprep.mubr.f32.mxu0 0.0
    %v353 = vand.u32 %v48, 4294901760
    %v354 = vsub.f32 %v48, %v353
    %355 = vmatmul.mubr.f32.gmra.mrb[0].mxu0 %v354
    %v356 = vpop.f32.mrb[0].mxu0
    %v357 = vadd.f32 %v260, %v356
    %v358 = vpop.f32.mrb[0].mxu0
    %v359 = vadd.f32 %v262, %v358
    %360 = vdwg.mxu0
    %v361 = vand.u32 %v24, 4294901760
    %362 = vmatprep.subr.mxu0 %v361
    %v363 = vand.u32 %v23, 4294901760
    %364 = vmatpush1.msra.mxu0 %v363
    %v365 = vand.u32 %v26, 4294901760
    %366 = vmatprep.subr.mxu0 %v365
    %v367 = vand.u32 %v25, 4294901760
    %368 = vmatpush1.msra.mxu0 %v367
    %v369 = vand.u32 %v28, 4294901760
    %370 = vmatprep.subr.mxu0 %v369
    %v371 = vand.u32 %v27, 4294901760
    %372 = vmatpush1.msra.mxu0 %v371
    %v373 = vand.u32 %v30, 4294901760
    %374 = vmatprep.subr.mxu0 %v373
    %v375 = vand.u32 %v29, 4294901760
    %376 = vmatpush1.msra.mxu0 %v375
    %377 = vmatprep.subr.mxu0 0.0
    %378 = vmatpush1.msra.mxu0 0.0
    %379 = vmatprep.subr.mxu0 0.0
    %380 = vmatpush1.msra.mxu0 0.0
    %381 = vmatprep.subr.mxu0 0.0
    %382 = vmatpush1.msra.mxu0 0.0
    %383 = vmatprep.subr.mxu0 0.0
    %384 = vmatpush1.msra.mxu0 0.0
    %385 = vmatprep.subr.mxu0 0.0
    %386 = vmatpush1.msra.mxu0 0.0
    %387 = vmatprep.subr.mxu0 0.0
    %388 = vmatpush1.msra.mxu0 0.0
    %389 = vmatprep.subr.mxu0 0.0
    %390 = vmatpush1.msra.mxu0 0.0
    %391 = vmatprep.subr.mxu0 0.0
    %392 = vmatpush1.msra.mxu0 0.0
    %393 = vmatprep.subr.mxu0 0.0
    %394 = vmatpush1.msra.mxu0 0.0
    %395 = vmatprep.subr.mxu0 0.0
    %396 = vmatpush1.msra.mxu0 0.0
    %397 = vmatprep.subr.mxu0 0.0
    %398 = vmatpush1.msra.mxu0 0.0
    %399 = vmatprep.subr.mxu0 0.0
    %400 = vmatpush1.msra.mxu0 0.0
    %401 = vmatprep.subr.mxu0 0.0
    %402 = vmatpush1.msra.mxu0 0.0
    %403 = vmatprep.subr.mxu0 0.0
    %404 = vmatpush1.msra.mxu0 0.0
    %405 = vmatprep.subr.mxu0 0.0
    %406 = vmatpush1.msra.mxu0 0.0
    %407 = vmatprep.subr.mxu0 0.0
    %408 = vmatpush1.msra.mxu0 0.0
    %409 = vmatprep.subr.mxu0 0.0
    %410 = vmatpush1.msra.mxu0 0.0
    %411 = vmatprep.subr.mxu0 0.0
    %412 = vmatpush1.msra.mxu0 0.0
    %413 = vmatprep.subr.mxu0 0.0
    %414 = vmatpush1.msra.mxu0 0.0
    %415 = vmatprep.subr.mxu0 0.0
    %416 = vmatpush1.msra.mxu0 0.0
    %417 = vmatprep.subr.mxu0 0.0
    %418 = vmatpush1.msra.mxu0 0.0
    %419 = vmatprep.subr.mxu0 0.0
    %420 = vmatpush1.msra.mxu0 0.0
    %421 = vmatprep.subr.mxu0 0.0
    %422 = vmatpush1.msra.mxu0 0.0
    %423 = vmatprep.subr.mxu0 0.0
    %424 = vmatpush1.msra.mxu0 0.0
    %425 = vmatprep.subr.mxu0 0.0
    %426 = vmatpush1.msra.mxu0 0.0
    %427 = vmatprep.subr.mxu0 0.0
    %428 = vmatpush1.msra.mxu0 0.0
    %429 = vmatprep.subr.mxu0 0.0
    %430 = vmatpush1.msra.mxu0 0.0
    %431 = vmatprep.subr.mxu0 0.0
    %432 = vmatpush1.msra.mxu0 0.0
    %433 = vmatprep.mubr.f32.mxu0 0.0
    %v434 = vand.u32 %v45, 4294901760
    %v435 = vsub.f32 %v45, %v434
    %v436 = vand.u32 %v435, 4294901760
    %437 = vmatmul.mubr.f32.gmra.mrb[0].mxu0 %v436
    %v438 = vpop.f32.mrb[0].mxu0
    %v439 = vadd.f32 %v349, %v438
    %v440 = vpop.f32.mrb[0].mxu0
    %v441 = vadd.f32 %v351, %v440
    %442 = vmatprep.mubr.f32.mxu0 0.0
    %v443 = vand.u32 %v48, 4294901760
    %v444 = vsub.f32 %v48, %v443
    %v445 = vand.u32 %v444, 4294901760
    %446 = vmatmul.mubr.f32.gmra.mrb[0].mxu0 %v445
    %v447 = vpop.f32.mrb[0].mxu0
    %v448 = vadd.f32 %v357, %v447
    %v449 = vpop.f32.mrb[0].mxu0
    %v450 = vadd.f32 %v359, %v449
    %451 = vdwg.mxu0
    %v452 = vand.u32 %v24, 4294901760
    %v453 = vsub.f32 %v24, %v452
    %v454 = vand.u32 %v453, 4294901760
    %455 = vmatprep.subr.mxu0 %v454
    %v456 = vand.u32 %v23, 4294901760
    %v457 = vsub.f32 %v23, %v456
    %v458 = vand.u32 %v457, 4294901760
    %459 = vmatpush1.msra.mxu0 %v458
    %v460 = vand.u32 %v26, 4294901760
    %v461 = vsub.f32 %v26, %v460
    %v462 = vand.u32 %v461, 4294901760
    %463 = vmatprep.subr.mxu0 %v462
    %v464 = vand.u32 %v25, 4294901760
    %v465 = vsub.f32 %v25, %v464
    %v466 = vand.u32 %v465, 4294901760
    %467 = vmatpush1.msra.mxu0 %v466
    %v468 = vand.u32 %v28, 4294901760
    %v469 = vsub.f32 %v28, %v468
    %v470 = vand.u32 %v469, 4294901760
    %471 = vmatprep.subr.mxu0 %v470
    %v472 = vand.u32 %v27, 4294901760
    %v473 = vsub.f32 %v27, %v472
    %v474 = vand.u32 %v473, 4294901760
    %475 = vmatpush1.msra.mxu0 %v474
    %v476 = vand.u32 %v30, 4294901760
    %v477 = vsub.f32 %v30, %v476
    %v478 = vand.u32 %v477, 4294901760
    %479 = vmatprep.subr.mxu0 %v478
    %v480 = vand.u32 %v29, 4294901760
    %v481 = vsub.f32 %v29, %v480
    %v482 = vand.u32 %v481, 4294901760
    %483 = vmatpush1.msra.mxu0 %v482
    %484 = vmatprep.subr.mxu0 0.0
    %485 = vmatpush1.msra.mxu0 0.0
    %486 = vmatprep.subr.mxu0 0.0
    %487 = vmatpush1.msra.mxu0 0.0
    %488 = vmatprep.subr.mxu0 0.0
    %489 = vmatpush1.msra.mxu0 0.0
    %490 = vmatprep.subr.mxu0 0.0
    %491 = vmatpush1.msra.mxu0 0.0
    %492 = vmatprep.subr.mxu0 0.0
    %493 = vmatpush1.msra.mxu0 0.0
    %494 = vmatprep.subr.mxu0 0.0
    %495 = vmatpush1.msra.mxu0 0.0
    %496 = vmatprep.subr.mxu0 0.0
    %497 = vmatpush1.msra.mxu0 0.0
    %498 = vmatprep.subr.mxu0 0.0
    %499 = vmatpush1.msra.mxu0 0.0
    %500 = vmatprep.subr.mxu0 0.0
    %501 = vmatpush1.msra.mxu0 0.0
    %502 = vmatprep.subr.mxu0 0.0
    %503 = vmatpush1.msra.mxu0 0.0
    %504 = vmatprep.subr.mxu0 0.0
    %505 = vmatpush1.msra.mxu0 0.0
    %506 = vmatprep.subr.mxu0 0.0
    %507 = vmatpush1.msra.mxu0 0.0
    %508 = vmatprep.subr.mxu0 0.0
    %509 = vmatpush1.msra.mxu0 0.0
    %510 = vmatprep.subr.mxu0 0.0
    %511 = vmatpush1.msra.mxu0 0.0
    %512 = vmatprep.subr.mxu0 0.0
    %513 = vmatpush1.msra.mxu0 0.0
    %514 = vmatprep.subr.mxu0 0.0
    %515 = vmatpush1.msra.mxu0 0.0
    %516 = vmatprep.subr.mxu0 0.0
    %517 = vmatpush1.msra.mxu0 0.0
    %518 = vmatprep.subr.mxu0 0.0
    %519 = vmatpush1.msra.mxu0 0.0
    %520 = vmatprep.subr.mxu0 0.0
    %521 = vmatpush1.msra.mxu0 0.0
    %522 = vmatprep.subr.mxu0 0.0
    %523 = vmatpush1.msra.mxu0 0.0
    %524 = vmatprep.subr.mxu0 0.0
    %525 = vmatpush1.msra.mxu0 0.0
    %526 = vmatprep.subr.mxu0 0.0
    %527 = vmatpush1.msra.mxu0 0.0
    %528 = vmatprep.subr.mxu0 0.0
    %529 = vmatpush1.msra.mxu0 0.0
    %530 = vmatprep.subr.mxu0 0.0
    %531 = vmatpush1.msra.mxu0 0.0
    %532 = vmatprep.subr.mxu0 0.0
    %533 = vmatpush1.msra.mxu0 0.0
    %534 = vmatprep.subr.mxu0 0.0
    %535 = vmatpush1.msra.mxu0 0.0
    %536 = vmatprep.subr.mxu0 0.0
    %537 = vmatpush1.msra.mxu0 0.0
    %538 = vmatprep.subr.mxu0 0.0
    %539 = vmatpush1.msra.mxu0 0.0
    %540 = vmatprep.mubr.f32.mxu0 0.0
    %v541 = vand.u32 %v45, 4294901760
    %542 = vmatmul.mubr.f32.gmra.mrb[0].mxu0 %v541
    %v543 = vpop.f32.mrb[0].mxu0
    %v544 = vadd.f32 %v439, %v543
    %v545 = vpop.f32.mrb[0].mxu0
    %v546 = vadd.f32 %v441, %v545
    %547 = vmatprep.mubr.f32.mxu0 0.0
    %v548 = vand.u32 %v48, 4294901760
    %549 = vmatmul.mubr.f32.gmra.mrb[0].mxu0 %v548
    %v550 = vpop.f32.mrb[0].mxu0
    %v551 = vadd.f32 %v448, %v550
    %v552 = vpop.f32.mrb[0].mxu0
    %v553 = vadd.f32 %v450, %v552
    %554 = vdwg.mxu0
    %v555 = vand.u32 %v24, 4294901760
    %556 = vmatprep.subr.mxu0 %v555
    %v557 = vand.u32 %v23, 4294901760
    %558 = vmatpush1.msra.mxu0 %v557
    %v559 = vand.u32 %v26, 4294901760
    %560 = vmatprep.subr.mxu0 %v559
    %v561 = vand.u32 %v25, 4294901760
    %562 = vmatpush1.msra.mxu0 %v561
    %v563 = vand.u32 %v28, 4294901760
    %564 = vmatprep.subr.mxu0 %v563
    %v565 = vand.u32 %v27, 4294901760
    %566 = vmatpush1.msra.mxu0 %v565
    %v567 = vand.u32 %v30, 4294901760
    %568 = vmatprep.subr.mxu0 %v567
    %v569 = vand.u32 %v29, 4294901760
    %570 = vmatpush1.msra.mxu0 %v569
    %571 = vmatprep.subr.mxu0 0.0
    %572 = vmatpush1.msra.mxu0 0.0
    %573 = vmatprep.subr.mxu0 0.0
    %574 = vmatpush1.msra.mxu0 0.0
    %575 = vmatprep.subr.mxu0 0.0
    %576 = vmatpush1.msra.mxu0 0.0
    %577 = vmatprep.subr.mxu0 0.0
    %578 = vmatpush1.msra.mxu0 0.0
    %579 = vmatprep.subr.mxu0 0.0
    %580 = vmatpush1.msra.mxu0 0.0
    %581 = vmatprep.subr.mxu0 0.0
    %582 = vmatpush1.msra.mxu0 0.0
    %583 = vmatprep.subr.mxu0 0.0
    %584 = vmatpush1.msra.mxu0 0.0
    %585 = vmatprep.subr.mxu0 0.0
    %586 = vmatpush1.msra.mxu0 0.0
    %587 = vmatprep.subr.mxu0 0.0
    %588 = vmatpush1.msra.mxu0 0.0
    %589 = vmatprep.subr.mxu0 0.0
    %590 = vmatpush1.msra.mxu0 0.0
    %591 = vmatprep.subr.mxu0 0.0
    %592 = vmatpush1.msra.mxu0 0.0
    %593 = vmatprep.subr.mxu0 0.0
    %594 = vmatpush1.msra.mxu0 0.0
    %595 = vmatprep.subr.mxu0 0.0
    %596 = vmatpush1.msra.mxu0 0.0
    %597 = vmatprep.subr.mxu0 0.0
    %598 = vmatpush1.msra.mxu0 0.0
    %599 = vmatprep.subr.mxu0 0.0
    %600 = vmatpush1.msra.mxu0 0.0
    %601 = vmatprep.subr.mxu0 0.0
    %602 = vmatpush1.msra.mxu0 0.0
    %603 = vmatprep.subr.mxu0 0.0
    %604 = vmatpush1.msra.mxu0 0.0
    %605 = vmatprep.subr.mxu0 0.0
    %606 = vmatpush1.msra.mxu0 0.0
    %607 = vmatprep.subr.mxu0 0.0
    %608 = vmatpush1.msra.mxu0 0.0
    %609 = vmatprep.subr.mxu0 0.0
    %610 = vmatpush1.msra.mxu0 0.0
    %611 = vmatprep.subr.mxu0 0.0
    %612 = vmatpush1.msra.mxu0 0.0
    %613 = vmatprep.subr.mxu0 0.0
    %614 = vmatpush1.msra.mxu0 0.0
    %615 = vmatprep.subr.mxu0 0.0
    %616 = vmatpush1.msra.mxu0 0.0
    %617 = vmatprep.subr.mxu0 0.0
    %618 = vmatpush1.msra.mxu0 0.0
    %619 = vmatprep.subr.mxu0 0.0
    %620 = vmatpush1.msra.mxu0 0.0
    %621 = vmatprep.subr.mxu0 0.0
    %622 = vmatpush1.msra.mxu0 0.0
    %623 = vmatprep.subr.mxu0 0.0
    %624 = vmatpush1.msra.mxu0 0.0
    %625 = vmatprep.subr.mxu0 0.0
    %626 = vmatpush1.msra.mxu0 0.0
    %627 = vmatprep.mubr.f32.mxu0 0.0
    %v628 = vand.u32 %v45, 4294901760
    %629 = vmatmul.mubr.f32.gmra.mrb[0].mxu0 %v628
    %v630 = vpop.f32.mrb[0].mxu0
    %v631 = vadd.f32 %v544, %v630
    %v632 = vpop.f32.mrb[0].mxu0
    %v633 = vadd.f32 %v546, %v632
    %634 = vmatprep.mubr.f32.mxu0 0.0
    %v635 = vand.u32 %v48, 4294901760
    %636 = vmatmul.mubr.f32.gmra.mrb[0].mxu0 %v635
    %v637 = vpop.f32.mrb[0].mxu0
    %v638 = vadd.f32 %v551, %v637
    %v639 = vpop.f32.mrb[0].mxu0
    %v640 = vadd.f32 %v553, %v639
    %641 = vdwg.mxu0
    %v642 = vmul.f32 %v631, 0.2
    %v643 = vmul.f32 %v633, 0.2
    %v644 = vmul.f32 %v638, 0.2
    %v645 = vmul.f32 %v640, 0.2
    %v646 = vmax.f32 %v631, %v642
    %v647 = vmax.f32 %v633, %v643
    %v648 = vmax.f32 %v638, %v644
    %v649 = vmax.f32 %v640, %v645
    %v650 = vld [vmem:[%s3] sm:$0xff]
    %v651 = vld [vmem:[%s3 + $0x8] sm:$0xff]
    %v652 = vld [vmem:[%s3 + $0x10] sm:$0xff]
    %v653 = vld [vmem:[%s3 + $0x18] sm:$0xff]
    %v654 = vld [vmem:[%s3 + $0x20] sm:$0xff]
    %v655 = vld [vmem:[%s3 + $0x28] sm:$0xff]
    %v656 = vld [vmem:[%s3 + $0x30] sm:$0xff]
    %v657 = vld [vmem:[%s3 + $0x38] sm:$0xff]
    %v658 = vld [vmem:[%s3 + $0x40] sm:$0xff]
    %v659 = vld [vmem:[%s3 + $0x48] sm:$0xff]
    %v660 = vld [vmem:[%s3 + $0x50] sm:$0xff]
    %v661 = vld [vmem:[%s3 + $0x58] sm:$0xff]
    %v662 = vld [vmem:[%s3 + $0x60] sm:$0xff]
    %v663 = vld [vmem:[%s3 + $0x68] sm:$0xff]
    %v664 = vld [vmem:[%s3 + $0x70] sm:$0xff]
    %v665 = vld [vmem:[%s3 + $0x78] sm:$0xff]
    %v666 = vld [vmem:[%s3 + $0x80] sm:$0xff]
    %v667 = vld [vmem:[%s3 + $0x88] sm:$0xff]
    %v668 = vld [vmem:[%s3 + $0x90] sm:$0xff]
    %v669 = vld [vmem:[%s3 + $0x98] sm:$0xff]
    %v670 = vld [vmem:[%s3 + $0xa0] sm:$0xff]
    %v671 = vld [vmem:[%s3 + $0xa8] sm:$0xff]
    %v672 = vld [vmem:[%s3 + $0xb0] sm:$0xff]
    %v673 = vld [vmem:[%s3 + $0xb8] sm:$0xff]
    %v674 = vld [vmem:[%s3 + $0xc0] sm:$0xff]
    %v675 = vld [vmem:[%s3 + $0xc8] sm:$0xff]
    %v676 = vld [vmem:[%s3 + $0xd0] sm:$0xff]
    %v677 = vld [vmem:[%s3 + $0xd8] sm:$0xff]
    %v678 = vld [vmem:[%s3 + $0xe0] sm:$0xff]
    %v679 = vld [vmem:[%s3 + $0xe8] sm:$0xff]
    %v680 = vld [vmem:[%s3 + $0xf0] sm:$0xff]
    %v681 = vld [vmem:[%s3 + $0xf8] sm:$0xff]
    %v682 = vld [vmem:[%s4] sm:$0x1]
    %v684 = vlaneseq
    %v685 = vshrl.u32 %v684, 7
    %v686 = vsub.s32 0, %v685
    %v687 = vrot.slane %v682, %v686
    %689 = vmatprep.subr.mxu0 0.0
    %v690 = vand.u32 %v650, 4294901760
    %691 = vmatpush1.msra.mxu0 %v690
    %692 = vmatprep.subr.mxu0 0.0
    %v693 = vand.u32 %v651, 4294901760
    %694 = vmatpush1.msra.mxu0 %v693
    %695 = vmatprep.subr.mxu0 0.0
    %v696 = vand.u32 %v652, 4294901760
    %697 = vmatpush1.msra.mxu0 %v696
    %698 = vmatprep.subr.mxu0 0.0
    %v699 = vand.u32 %v653, 4294901760
    %700 = vmatpush1.msra.mxu0 %v699
    %701 = vmatprep.subr.mxu0 0.0
    %v702 = vand.u32 %v654, 4294901760
    %703 = vmatpush1.msra.mxu0 %v702
    %704 = vmatprep.subr.mxu0 0.0
    %v705 = vand.u32 %v655, 4294901760
    %706 = vmatpush1.msra.mxu0 %v705
    %707 = vmatprep.subr.mxu0 0.0
    %v708 = vand.u32 %v656, 4294901760
    %709 = vmatpush1.msra.mxu0 %v708
    %710 = vmatprep.subr.mxu0 0.0
    %v711 = vand.u32 %v657, 4294901760
    %712 = vmatpush1.msra.mxu0 %v711
    %713 = vmatprep.subr.mxu0 0.0
    %v714 = vand.u32 %v658, 4294901760
    %715 = vmatpush1.msra.mxu0 %v714
    %716 = vmatprep.subr.mxu0 0.0
    %v717 = vand.u32 %v659, 4294901760
    %718 = vmatpush1.msra.mxu0 %v717
    %719 = vmatprep.subr.mxu0 0.0
    %v720 = vand.u32 %v660, 4294901760
    %721 = vmatpush1.msra.mxu0 %v720
    %722 = vmatprep.subr.mxu0 0.0
    %v723 = vand.u32 %v661, 4294901760
    %724 = vmatpush1.msra.mxu0 %v723
    %725 = vmatprep.subr.mxu0 0.0
    %v726 = vand.u32 %v662, 4294901760
    %727 = vmatpush1.msra.mxu0 %v726
    %728 = vmatprep.subr.mxu0 0.0
    %v729 = vand.u32 %v663, 4294901760
    %730 = vmatpush1.msra.mxu0 %v729
    %731 = vmatprep.subr.mxu0 0.0
    %v732 = vand.u32 %v664, 4294901760
    %733 = vmatpush1.msra.mxu0 %v732
    %734 = vmatprep.subr.mxu0 0.0
    %v735 = vand.u32 %v665, 4294901760
    %736 = vmatpush1.msra.mxu0 %v735
    %737 = vmatprep.subr.mxu0 0.0
    %v738 = vand.u32 %v666, 4294901760
    %739 = vmatpush1.msra.mxu0 %v738
    %740 = vmatprep.subr.mxu0 0.0
    %v741 = vand.u32 %v667, 4294901760
    %742 = vmatpush1.msra.mxu0 %v741
    %743 = vmatprep.subr.mxu0 0.0
    %v744 = vand.u32 %v668, 4294901760
    %745 = vmatpush1.msra.mxu0 %v744
    %746 = vmatprep.subr.mxu0 0.0
    %v747 = vand.u32 %v669, 4294901760
    %748 = vmatpush1.msra.mxu0 %v747
    %749 = vmatprep.subr.mxu0 0.0
    %v750 = vand.u32 %v670, 4294901760
    %751 = vmatpush1.msra.mxu0 %v750
    %752 = vmatprep.subr.mxu0 0.0
    %v753 = vand.u32 %v671, 4294901760
    %754 = vmatpush1.msra.mxu0 %v753
    %755 = vmatprep.subr.mxu0 0.0
    %v756 = vand.u32 %v672, 4294901760
    %757 = vmatpush1.msra.mxu0 %v756
    %758 = vmatprep.subr.mxu0 0.0
    %v759 = vand.u32 %v673, 4294901760
    %760 = vmatpush1.msra.mxu0 %v759
    %761 = vmatprep.subr.mxu0 0.0
    %v762 = vand.u32 %v674, 4294901760
    %763 = vmatpush1.msra.mxu0 %v762
    %764 = vmatprep.subr.mxu0 0.0
    %v765 = vand.u32 %v675, 4294901760
    %766 = vmatpush1.msra.mxu0 %v765
    %767 = vmatprep.subr.mxu0 0.0
    %v768 = vand.u32 %v676, 4294901760
    %769 = vmatpush1.msra.mxu0 %v768
    %770 = vmatprep.subr.mxu0 0.0
    %v771 = vand.u32 %v677, 4294901760
    %772 = vmatpush1.msra.mxu0 %v771
    %773 = vmatprep.subr.mxu0 0.0
    %v774 = vand.u32 %v678, 4294901760
    %775 = vmatpush1.msra.mxu0 %v774
    %776 = vmatprep.subr.mxu0 0.0
    %v777 = vand.u32 %v679, 4294901760
    %778 = vmatpush1.msra.mxu0 %v777
    %779 = vmatprep.subr.mxu0 0.0
    %v780 = vand.u32 %v680, 4294901760
    %781 = vmatpush1.msra.mxu0 %v780
    %782 = vmatprep.subr.mxu0 0.0
    %v783 = vand.u32 %v681, 4294901760
    %784 = vmatpush1.msra.mxu0 %v783
    %v785 = vand.u32 %v647, 4294901760
    %v786 = vsub.f32 %v647, %v785
    %v787 = vand.u32 %v786, 4294901760
    %v788 = vsub.f32 %v786, %v787
    %v789 = vand.u32 %v788, 4294901760
    %790 = vmatprep.mubr.f32.mxu0 %v789
    %v791 = vand.u32 %v646, 4294901760
    %v792 = vsub.f32 %v646, %v791
    %v793 = vand.u32 %v792, 4294901760
    %v794 = vsub.f32 %v792, %v793
    %v795 = vand.u32 %v794, 4294901760
    %796 = vmatmul.mubr.f32.gmra.mrb[0].mxu0 %v795
    %v797 = vpop.f32.mrb[0].mxu0
    %v798 = vadd.f32 %v687, %v797
    %v799 = vpop.f32.mrb[0].mxu0
    %v800 = vand.u32 %v649, 4294901760
    %v801 = vsub.f32 %v649, %v800
    %v802 = vand.u32 %v801, 4294901760
    %v803 = vsub.f32 %v801, %v802
    %v804 = vand.u32 %v803, 4294901760
    %805 = vmatprep.mubr.f32.mxu0 %v804
    %v806 = vand.u32 %v648, 4294901760
    %v807 = vsub.f32 %v648, %v806
    %v808 = vand.u32 %v807, 4294901760
    %v809 = vsub.f32 %v807, %v808
    %v810 = vand.u32 %v809, 4294901760
    %811 = vmatmul.mubr.f32.gmra.mrb[0].mxu0 %v810
    %v812 = vpop.f32.mrb[0].mxu0
    %v813 = vadd.f32 %v687, %v812
    %v814 = vpop.f32.mrb[0].mxu0
    %815 = vdwg.mxu0
    %816 = vmatprep.subr.mxu0 0.0
    %v817 = vand.u32 %v650, 4294901760
    %v818 = vsub.f32 %v650, %v817
    %v819 = vand.u32 %v818, 4294901760
    %v820 = vsub.f32 %v818, %v819
    %v821 = vand.u32 %v820, 4294901760
    %822 = vmatpush1.msra.mxu0 %v821
    %823 = vmatprep.subr.mxu0 0.0
    %v824 = vand.u32 %v651, 4294901760
    %v825 = vsub.f32 %v651, %v824
    %v826 = vand.u32 %v825, 4294901760
    %v827 = vsub.f32 %v825, %v826
    %v828 = vand.u32 %v827, 4294901760
    %829 = vmatpush1.msra.mxu0 %v828
    %830 = vmatprep.subr.mxu0 0.0
    %v831 = vand.u32 %v652, 4294901760
    %v832 = vsub.f32 %v652, %v831
    %v833 = vand.u32 %v832, 4294901760
    %v834 = vsub.f32 %v832, %v833
    %v835 = vand.u32 %v834, 4294901760
    %836 = vmatpush1.msra.mxu0 %v835
    %837 = vmatprep.subr.mxu0 0.0
    %v838 = vand.u32 %v653, 4294901760
    %v839 = vsub.f32 %v653, %v838
    %v840 = vand.u32 %v839, 4294901760
    %v841 = vsub.f32 %v839, %v840
    %v842 = vand.u32 %v841, 4294901760
    %843 = vmatpush1.msra.mxu0 %v842
    %844 = vmatprep.subr.mxu0 0.0
    %v845 = vand.u32 %v654, 4294901760
    %v846 = vsub.f32 %v654, %v845
    %v847 = vand.u32 %v846, 4294901760
    %v848 = vsub.f32 %v846, %v847
    %v849 = vand.u32 %v848, 4294901760
    %850 = vmatpush1.msra.mxu0 %v849
    %851 = vmatprep.subr.mxu0 0.0
    %v852 = vand.u32 %v655, 4294901760
    %v853 = vsub.f32 %v655, %v852
    %v854 = vand.u32 %v853, 4294901760
    %v855 = vsub.f32 %v853, %v854
    %v856 = vand.u32 %v855, 4294901760
    %857 = vmatpush1.msra.mxu0 %v856
    %858 = vmatprep.subr.mxu0 0.0
    %v859 = vand.u32 %v656, 4294901760
    %v860 = vsub.f32 %v656, %v859
    %v861 = vand.u32 %v860, 4294901760
    %v862 = vsub.f32 %v860, %v861
    %v863 = vand.u32 %v862, 4294901760
    %864 = vmatpush1.msra.mxu0 %v863
    %865 = vmatprep.subr.mxu0 0.0
    %v866 = vand.u32 %v657, 4294901760
    %v867 = vsub.f32 %v657, %v866
    %v868 = vand.u32 %v867, 4294901760
    %v869 = vsub.f32 %v867, %v868
    %v870 = vand.u32 %v869, 4294901760
    %871 = vmatpush1.msra.mxu0 %v870
    %872 = vmatprep.subr.mxu0 0.0
    %v873 = vand.u32 %v658, 4294901760
    %v874 = vsub.f32 %v658, %v873
    %v875 = vand.u32 %v874, 4294901760
    %v876 = vsub.f32 %v874, %v875
    %v877 = vand.u32 %v876, 4294901760
    %878 = vmatpush1.msra.mxu0 %v877
    %879 = vmatprep.subr.mxu0 0.0
    %v880 = vand.u32 %v659, 4294901760
    %v881 = vsub.f32 %v659, %v880
    %v882 = vand.u32 %v881, 4294901760
    %v883 = vsub.f32 %v881, %v882
    %v884 = vand.u32 %v883, 4294901760
    %885 = vmatpush1.msra.mxu0 %v884
    %886 = vmatprep.subr.mxu0 0.0
    %v887 = vand.u32 %v660, 4294901760
    %v888 = vsub.f32 %v660, %v887
    %v889 = vand.u32 %v888, 4294901760
    %v890 = vsub.f32 %v888, %v889
    %v891 = vand.u32 %v890, 4294901760
    %892 = vmatpush1.msra.mxu0 %v891
    %893 = vmatprep.subr.mxu0 0.0
    %v894 = vand.u32 %v661, 4294901760
    %v895 = vsub.f32 %v661, %v894
    %v896 = vand.u32 %v895, 4294901760
    %v897 = vsub.f32 %v895, %v896
    %v898 = vand.u32 %v897, 4294901760
    %899 = vmatpush1.msra.mxu0 %v898
    %900 = vmatprep.subr.mxu0 0.0
    %v901 = vand.u32 %v662, 4294901760
    %v902 = vsub.f32 %v662, %v901
    %v903 = vand.u32 %v902, 4294901760
    %v904 = vsub.f32 %v902, %v903
    %v905 = vand.u32 %v904, 4294901760
    %906 = vmatpush1.msra.mxu0 %v905
    %907 = vmatprep.subr.mxu0 0.0
    %v908 = vand.u32 %v663, 4294901760
    %v909 = vsub.f32 %v663, %v908
    %v910 = vand.u32 %v909, 4294901760
    %v911 = vsub.f32 %v909, %v910
    %v912 = vand.u32 %v911, 4294901760
    %913 = vmatpush1.msra.mxu0 %v912
    %914 = vmatprep.subr.mxu0 0.0
    %v915 = vand.u32 %v664, 4294901760
    %v916 = vsub.f32 %v664, %v915
    %v917 = vand.u32 %v916, 4294901760
    %v918 = vsub.f32 %v916, %v917
    %v919 = vand.u32 %v918, 4294901760
    %920 = vmatpush1.msra.mxu0 %v919
    %921 = vmatprep.subr.mxu0 0.0
    %v922 = vand.u32 %v665, 4294901760
    %v923 = vsub.f32 %v665, %v922
    %v924 = vand.u32 %v923, 4294901760
    %v925 = vsub.f32 %v923, %v924
    %v926 = vand.u32 %v925, 4294901760
    %927 = vmatpush1.msra.mxu0 %v926
    %928 = vmatprep.subr.mxu0 0.0
    %v929 = vand.u32 %v666, 4294901760
    %v930 = vsub.f32 %v666, %v929
    %v931 = vand.u32 %v930, 4294901760
    %v932 = vsub.f32 %v930, %v931
    %v933 = vand.u32 %v932, 4294901760
    %934 = vmatpush1.msra.mxu0 %v933
    %935 = vmatprep.subr.mxu0 0.0
    %v936 = vand.u32 %v667, 4294901760
    %v937 = vsub.f32 %v667, %v936
    %v938 = vand.u32 %v937, 4294901760
    %v939 = vsub.f32 %v937, %v938
    %v940 = vand.u32 %v939, 4294901760
    %941 = vmatpush1.msra.mxu0 %v940
    %942 = vmatprep.subr.mxu0 0.0
    %v943 = vand.u32 %v668, 4294901760
    %v944 = vsub.f32 %v668, %v943
    %v945 = vand.u32 %v944, 4294901760
    %v946 = vsub.f32 %v944, %v945
    %v947 = vand.u32 %v946, 4294901760
    %948 = vmatpush1.msra.mxu0 %v947
    %949 = vmatprep.subr.mxu0 0.0
    %v950 = vand.u32 %v669, 4294901760
    %v951 = vsub.f32 %v669, %v950
    %v952 = vand.u32 %v951, 4294901760
    %v953 = vsub.f32 %v951, %v952
    %v954 = vand.u32 %v953, 4294901760
    %955 = vmatpush1.msra.mxu0 %v954
    %956 = vmatprep.subr.mxu0 0.0
    %v957 = vand.u32 %v670, 4294901760
    %v958 = vsub.f32 %v670, %v957
    %v959 = vand.u32 %v958, 4294901760
    %v960 = vsub.f32 %v958, %v959
    %v961 = vand.u32 %v960, 4294901760
    %962 = vmatpush1.msra.mxu0 %v961
    %963 = vmatprep.subr.mxu0 0.0
    %v964 = vand.u32 %v671, 4294901760
    %v965 = vsub.f32 %v671, %v964
    %v966 = vand.u32 %v965, 4294901760
    %v967 = vsub.f32 %v965, %v966
    %v968 = vand.u32 %v967, 4294901760
    %969 = vmatpush1.msra.mxu0 %v968
    %970 = vmatprep.subr.mxu0 0.0
    %v971 = vand.u32 %v672, 4294901760
    %v972 = vsub.f32 %v672, %v971
    %v973 = vand.u32 %v972, 4294901760
    %v974 = vsub.f32 %v972, %v973
    %v975 = vand.u32 %v974, 4294901760
    %976 = vmatpush1.msra.mxu0 %v975
    %977 = vmatprep.subr.mxu0 0.0
    %v978 = vand.u32 %v673, 4294901760
    %v979 = vsub.f32 %v673, %v978
    %v980 = vand.u32 %v979, 4294901760
    %v981 = vsub.f32 %v979, %v980
    %v982 = vand.u32 %v981, 4294901760
    %983 = vmatpush1.msra.mxu0 %v982
    %984 = vmatprep.subr.mxu0 0.0
    %v985 = vand.u32 %v674, 4294901760
    %v986 = vsub.f32 %v674, %v985
    %v987 = vand.u32 %v986, 4294901760
    %v988 = vsub.f32 %v986, %v987
    %v989 = vand.u32 %v988, 4294901760
    %990 = vmatpush1.msra.mxu0 %v989
    %991 = vmatprep.subr.mxu0 0.0
    %v992 = vand.u32 %v675, 4294901760
    %v993 = vsub.f32 %v675, %v992
    %v994 = vand.u32 %v993, 4294901760
    %v995 = vsub.f32 %v993, %v994
    %v996 = vand.u32 %v995, 4294901760
    %997 = vmatpush1.msra.mxu0 %v996
    %998 = vmatprep.subr.mxu0 0.0
    %v999 = vand.u32 %v676, 4294901760
    %v1000 = vsub.f32 %v676, %v999
    %v1001 = vand.u32 %v1000, 4294901760
    %v1002 = vsub.f32 %v1000, %v1001
    %v1003 = vand.u32 %v1002, 4294901760
    %1004 = vmatpush1.msra.mxu0 %v1003
    %1005 = vmatprep.subr.mxu0 0.0
    %v1006 = vand.u32 %v677, 4294901760
    %v1007 = vsub.f32 %v677, %v1006
    %v1008 = vand.u32 %v1007, 4294901760
    %v1009 = vsub.f32 %v1007, %v1008
    %v1010 = vand.u32 %v1009, 4294901760
    %1011 = vmatpush1.msra.mxu0 %v1010
    %1012 = vmatprep.subr.mxu0 0.0
    %v1013 = vand.u32 %v678, 4294901760
    %v1014 = vsub.f32 %v678, %v1013
    %v1015 = vand.u32 %v1014, 4294901760
    %v1016 = vsub.f32 %v1014, %v1015
    %v1017 = vand.u32 %v1016, 4294901760
    %1018 = vmatpush1.msra.mxu0 %v1017
    %1019 = vmatprep.subr.mxu0 0.0
    %v1020 = vand.u32 %v679, 4294901760
    %v1021 = vsub.f32 %v679, %v1020
    %v1022 = vand.u32 %v1021, 4294901760
    %v1023 = vsub.f32 %v1021, %v1022
    %v1024 = vand.u32 %v1023, 4294901760
    %1025 = vmatpush1.msra.mxu0 %v1024
    %1026 = vmatprep.subr.mxu0 0.0
    %v1027 = vand.u32 %v680, 4294901760
    %v1028 = vsub.f32 %v680, %v1027
    %v1029 = vand.u32 %v1028, 4294901760
    %v1030 = vsub.f32 %v1028, %v1029
    %v1031 = vand.u32 %v1030, 4294901760
    %1032 = vmatpush1.msra.mxu0 %v1031
    %1033 = vmatprep.subr.mxu0 0.0
    %v1034 = vand.u32 %v681, 4294901760
    %v1035 = vsub.f32 %v681, %v1034
    %v1036 = vand.u32 %v1035, 4294901760
    %v1037 = vsub.f32 %v1035, %v1036
    %v1038 = vand.u32 %v1037, 4294901760
    %1039 = vmatpush1.msra.mxu0 %v1038
    %v1040 = vand.u32 %v647, 4294901760
    %1041 = vmatprep.mubr.f32.mxu0 %v1040
    %v1042 = vand.u32 %v646, 4294901760
    %1043 = vmatmul.mubr.f32.gmra.mrb[0].mxu0 %v1042
    %v1044 = vpop.f32.mrb[0].mxu0
    %v1045 = vadd.f32 %v798, %v1044
    %v1046 = vpop.f32.mrb[0].mxu0
    %v1047 = vand.u32 %v649, 4294901760
    %1048 = vmatprep.mubr.f32.mxu0 %v1047
    %v1049 = vand.u32 %v648, 4294901760
    %1050 = vmatmul.mubr.f32.gmra.mrb[0].mxu0 %v1049
    %v1051 = vpop.f32.mrb[0].mxu0
    %v1052 = vadd.f32 %v813, %v1051
    %v1053 = vpop.f32.mrb[0].mxu0
    %1054 = vdwg.mxu0
    %1055 = vmatprep.subr.mxu0 0.0
    %v1056 = vand.u32 %v650, 4294901760
    %v1057 = vsub.f32 %v650, %v1056
    %1058 = vmatpush1.msra.mxu0 %v1057
    %1059 = vmatprep.subr.mxu0 0.0
    %v1060 = vand.u32 %v651, 4294901760
    %v1061 = vsub.f32 %v651, %v1060
    %1062 = vmatpush1.msra.mxu0 %v1061
    %1063 = vmatprep.subr.mxu0 0.0
    %v1064 = vand.u32 %v652, 4294901760
    %v1065 = vsub.f32 %v652, %v1064
    %1066 = vmatpush1.msra.mxu0 %v1065
    %1067 = vmatprep.subr.mxu0 0.0
    %v1068 = vand.u32 %v653, 4294901760
    %v1069 = vsub.f32 %v653, %v1068
    %1070 = vmatpush1.msra.mxu0 %v1069
    %1071 = vmatprep.subr.mxu0 0.0
    %v1072 = vand.u32 %v654, 4294901760
    %v1073 = vsub.f32 %v654, %v1072
    %1074 = vmatpush1.msra.mxu0 %v1073
    %1075 = vmatprep.subr.mxu0 0.0
    %v1076 = vand.u32 %v655, 4294901760
    %v1077 = vsub.f32 %v655, %v1076
    %1078 = vmatpush1.msra.mxu0 %v1077
    %1079 = vmatprep.subr.mxu0 0.0
    %v1080 = vand.u32 %v656, 4294901760
    %v1081 = vsub.f32 %v656, %v1080
    %1082 = vmatpush1.msra.mxu0 %v1081
    %1083 = vmatprep.subr.mxu0 0.0
    %v1084 = vand.u32 %v657, 4294901760
    %v1085 = vsub.f32 %v657, %v1084
    %1086 = vmatpush1.msra.mxu0 %v1085
    %1087 = vmatprep.subr.mxu0 0.0
    %v1088 = vand.u32 %v658, 4294901760
    %v1089 = vsub.f32 %v658, %v1088
    %1090 = vmatpush1.msra.mxu0 %v1089
    %1091 = vmatprep.subr.mxu0 0.0
    %v1092 = vand.u32 %v659, 4294901760
    %v1093 = vsub.f32 %v659, %v1092
    %1094 = vmatpush1.msra.mxu0 %v1093
    %1095 = vmatprep.subr.mxu0 0.0
    %v1096 = vand.u32 %v660, 4294901760
    %v1097 = vsub.f32 %v660, %v1096
    %1098 = vmatpush1.msra.mxu0 %v1097
    %1099 = vmatprep.subr.mxu0 0.0
    %v1100 = vand.u32 %v661, 4294901760
    %v1101 = vsub.f32 %v661, %v1100
    %1102 = vmatpush1.msra.mxu0 %v1101
    %1103 = vmatprep.subr.mxu0 0.0
    %v1104 = vand.u32 %v662, 4294901760
    %v1105 = vsub.f32 %v662, %v1104
    %1106 = vmatpush1.msra.mxu0 %v1105
    %1107 = vmatprep.subr.mxu0 0.0
    %v1108 = vand.u32 %v663, 4294901760
    %v1109 = vsub.f32 %v663, %v1108
    %1110 = vmatpush1.msra.mxu0 %v1109
    %1111 = vmatprep.subr.mxu0 0.0
    %v1112 = vand.u32 %v664, 4294901760
    %v1113 = vsub.f32 %v664, %v1112
    %1114 = vmatpush1.msra.mxu0 %v1113
    %1115 = vmatprep.subr.mxu0 0.0
    %v1116 = vand.u32 %v665, 4294901760
    %v1117 = vsub.f32 %v665, %v1116
    %1118 = vmatpush1.msra.mxu0 %v1117
    %1119 = vmatprep.subr.mxu0 0.0
    %v1120 = vand.u32 %v666, 4294901760
    %v1121 = vsub.f32 %v666, %v1120
    %1122 = vmatpush1.msra.mxu0 %v1121
    %1123 = vmatprep.subr.mxu0 0.0
    %v1124 = vand.u32 %v667, 4294901760
    %v1125 = vsub.f32 %v667, %v1124
    %1126 = vmatpush1.msra.mxu0 %v1125
    %1127 = vmatprep.subr.mxu0 0.0
    %v1128 = vand.u32 %v668, 4294901760
    %v1129 = vsub.f32 %v668, %v1128
    %1130 = vmatpush1.msra.mxu0 %v1129
    %1131 = vmatprep.subr.mxu0 0.0
    %v1132 = vand.u32 %v669, 4294901760
    %v1133 = vsub.f32 %v669, %v1132
    %1134 = vmatpush1.msra.mxu0 %v1133
    %1135 = vmatprep.subr.mxu0 0.0
    %v1136 = vand.u32 %v670, 4294901760
    %v1137 = vsub.f32 %v670, %v1136
    %1138 = vmatpush1.msra.mxu0 %v1137
    %1139 = vmatprep.subr.mxu0 0.0
    %v1140 = vand.u32 %v671, 4294901760
    %v1141 = vsub.f32 %v671, %v1140
    %1142 = vmatpush1.msra.mxu0 %v1141
    %1143 = vmatprep.subr.mxu0 0.0
    %v1144 = vand.u32 %v672, 4294901760
    %v1145 = vsub.f32 %v672, %v1144
    %1146 = vmatpush1.msra.mxu0 %v1145
    %1147 = vmatprep.subr.mxu0 0.0
    %v1148 = vand.u32 %v673, 4294901760
    %v1149 = vsub.f32 %v673, %v1148
    %1150 = vmatpush1.msra.mxu0 %v1149
    %1151 = vmatprep.subr.mxu0 0.0
    %v1152 = vand.u32 %v674, 4294901760
    %v1153 = vsub.f32 %v674, %v1152
    %1154 = vmatpush1.msra.mxu0 %v1153
    %1155 = vmatprep.subr.mxu0 0.0
    %v1156 = vand.u32 %v675, 4294901760
    %v1157 = vsub.f32 %v675, %v1156
    %1158 = vmatpush1.msra.mxu0 %v1157
    %1159 = vmatprep.subr.mxu0 0.0
    %v1160 = vand.u32 %v676, 4294901760
    %v1161 = vsub.f32 %v676, %v1160
    %1162 = vmatpush1.msra.mxu0 %v1161
    %1163 = vmatprep.subr.mxu0 0.0
    %v1164 = vand.u32 %v677, 4294901760
    %v1165 = vsub.f32 %v677, %v1164
    %1166 = vmatpush1.msra.mxu0 %v1165
    %1167 = vmatprep.subr.mxu0 0.0
    %v1168 = vand.u32 %v678, 4294901760
    %v1169 = vsub.f32 %v678, %v1168
    %1170 = vmatpush1.msra.mxu0 %v1169
    %1171 = vmatprep.subr.mxu0 0.0
    %v1172 = vand.u32 %v679, 4294901760
    %v1173 = vsub.f32 %v679, %v1172
    %1174 = vmatpush1.msra.mxu0 %v1173
    %1175 = vmatprep.subr.mxu0 0.0
    %v1176 = vand.u32 %v680, 4294901760
    %v1177 = vsub.f32 %v680, %v1176
    %1178 = vmatpush1.msra.mxu0 %v1177
    %1179 = vmatprep.subr.mxu0 0.0
    %v1180 = vand.u32 %v681, 4294901760
    %v1181 = vsub.f32 %v681, %v1180
    %1182 = vmatpush1.msra.mxu0 %v1181
    %v1183 = vand.u32 %v647, 4294901760
    %v1184 = vsub.f32 %v647, %v1183
    %1185 = vmatprep.mubr.f32.mxu0 %v1184
    %v1186 = vand.u32 %v646, 4294901760
    %v1187 = vsub.f32 %v646, %v1186
    %1188 = vmatmul.mubr.f32.gmra.mrb[0].mxu0 %v1187
    %v1189 = vpop.f32.mrb[0].mxu0
    %v1190 = vadd.f32 %v1045, %v1189
    %v1191 = vpop.f32.mrb[0].mxu0
    %v1192 = vand.u32 %v649, 4294901760
    %v1193 = vsub.f32 %v649, %v1192
    %1194 = vmatprep.mubr.f32.mxu0 %v1193
    %v1195 = vand.u32 %v648, 4294901760
    %v1196 = vsub.f32 %v648, %v1195
    %1197 = vmatmul.mubr.f32.gmra.mrb[0].mxu0 %v1196
    %v1198 = vpop.f32.mrb[0].mxu0
    %v1199 = vadd.f32 %v1052, %v1198
    %v1200 = vpop.f32.mrb[0].mxu0
    %1201 = vdwg.mxu0
    %1202 = vmatprep.subr.mxu0 0.0
    %v1203 = vand.u32 %v650, 4294901760
    %1204 = vmatpush1.msra.mxu0 %v1203
    %1205 = vmatprep.subr.mxu0 0.0
    %v1206 = vand.u32 %v651, 4294901760
    %1207 = vmatpush1.msra.mxu0 %v1206
    %1208 = vmatprep.subr.mxu0 0.0
    %v1209 = vand.u32 %v652, 4294901760
    %1210 = vmatpush1.msra.mxu0 %v1209
    %1211 = vmatprep.subr.mxu0 0.0
    %v1212 = vand.u32 %v653, 4294901760
    %1213 = vmatpush1.msra.mxu0 %v1212
    %1214 = vmatprep.subr.mxu0 0.0
    %v1215 = vand.u32 %v654, 4294901760
    %1216 = vmatpush1.msra.mxu0 %v1215
    %1217 = vmatprep.subr.mxu0 0.0
    %v1218 = vand.u32 %v655, 4294901760
    %1219 = vmatpush1.msra.mxu0 %v1218
    %1220 = vmatprep.subr.mxu0 0.0
    %v1221 = vand.u32 %v656, 4294901760
    %1222 = vmatpush1.msra.mxu0 %v1221
    %1223 = vmatprep.subr.mxu0 0.0
    %v1224 = vand.u32 %v657, 4294901760
    %1225 = vmatpush1.msra.mxu0 %v1224
    %1226 = vmatprep.subr.mxu0 0.0
    %v1227 = vand.u32 %v658, 4294901760
    %1228 = vmatpush1.msra.mxu0 %v1227
    %1229 = vmatprep.subr.mxu0 0.0
    %v1230 = vand.u32 %v659, 4294901760
    %1231 = vmatpush1.msra.mxu0 %v1230
    %1232 = vmatprep.subr.mxu0 0.0
    %v1233 = vand.u32 %v660, 4294901760
    %1234 = vmatpush1.msra.mxu0 %v1233
    %1235 = vmatprep.subr.mxu0 0.0
    %v1236 = vand.u32 %v661, 4294901760
    %1237 = vmatpush1.msra.mxu0 %v1236
    %1238 = vmatprep.subr.mxu0 0.0
    %v1239 = vand.u32 %v662, 4294901760
    %1240 = vmatpush1.msra.mxu0 %v1239
    %1241 = vmatprep.subr.mxu0 0.0
    %v1242 = vand.u32 %v663, 4294901760
    %1243 = vmatpush1.msra.mxu0 %v1242
    %1244 = vmatprep.subr.mxu0 0.0
    %v1245 = vand.u32 %v664, 4294901760
    %1246 = vmatpush1.msra.mxu0 %v1245
    %1247 = vmatprep.subr.mxu0 0.0
    %v1248 = vand.u32 %v665, 4294901760
    %1249 = vmatpush1.msra.mxu0 %v1248
    %1250 = vmatprep.subr.mxu0 0.0
    %v1251 = vand.u32 %v666, 4294901760
    %1252 = vmatpush1.msra.mxu0 %v1251
    %1253 = vmatprep.subr.mxu0 0.0
    %v1254 = vand.u32 %v667, 4294901760
    %1255 = vmatpush1.msra.mxu0 %v1254
    %1256 = vmatprep.subr.mxu0 0.0
    %v1257 = vand.u32 %v668, 4294901760
    %1258 = vmatpush1.msra.mxu0 %v1257
    %1259 = vmatprep.subr.mxu0 0.0
    %v1260 = vand.u32 %v669, 4294901760
    %1261 = vmatpush1.msra.mxu0 %v1260
    %1262 = vmatprep.subr.mxu0 0.0
    %v1263 = vand.u32 %v670, 4294901760
    %1264 = vmatpush1.msra.mxu0 %v1263
    %1265 = vmatprep.subr.mxu0 0.0
    %v1266 = vand.u32 %v671, 4294901760
    %1267 = vmatpush1.msra.mxu0 %v1266
    %1268 = vmatprep.subr.mxu0 0.0
    %v1269 = vand.u32 %v672, 4294901760
    %1270 = vmatpush1.msra.mxu0 %v1269
    %1271 = vmatprep.subr.mxu0 0.0
    %v1272 = vand.u32 %v673, 4294901760
    %1273 = vmatpush1.msra.mxu0 %v1272
    %1274 = vmatprep.subr.mxu0 0.0
    %v1275 = vand.u32 %v674, 4294901760
    %1276 = vmatpush1.msra.mxu0 %v1275
    %1277 = vmatprep.subr.mxu0 0.0
    %v1278 = vand.u32 %v675, 4294901760
    %1279 = vmatpush1.msra.mxu0 %v1278
    %1280 = vmatprep.subr.mxu0 0.0
    %v1281 = vand.u32 %v676, 4294901760
    %1282 = vmatpush1.msra.mxu0 %v1281
    %1283 = vmatprep.subr.mxu0 0.0
    %v1284 = vand.u32 %v677, 4294901760
    %1285 = vmatpush1.msra.mxu0 %v1284
    %1286 = vmatprep.subr.mxu0 0.0
    %v1287 = vand.u32 %v678, 4294901760
    %1288 = vmatpush1.msra.mxu0 %v1287
    %1289 = vmatprep.subr.mxu0 0.0
    %v1290 = vand.u32 %v679, 4294901760
    %1291 = vmatpush1.msra.mxu0 %v1290
    %1292 = vmatprep.subr.mxu0 0.0
    %v1293 = vand.u32 %v680, 4294901760
    %1294 = vmatpush1.msra.mxu0 %v1293
    %1295 = vmatprep.subr.mxu0 0.0
    %v1296 = vand.u32 %v681, 4294901760
    %1297 = vmatpush1.msra.mxu0 %v1296
    %v1298 = vand.u32 %v647, 4294901760
    %v1299 = vsub.f32 %v647, %v1298
    %v1300 = vand.u32 %v1299, 4294901760
    %1301 = vmatprep.mubr.f32.mxu0 %v1300
    %v1302 = vand.u32 %v646, 4294901760
    %v1303 = vsub.f32 %v646, %v1302
    %v1304 = vand.u32 %v1303, 4294901760
    %1305 = vmatmul.mubr.f32.gmra.mrb[0].mxu0 %v1304
    %v1306 = vpop.f32.mrb[0].mxu0
    %v1307 = vadd.f32 %v1190, %v1306
    %v1308 = vpop.f32.mrb[0].mxu0
    %v1309 = vand.u32 %v649, 4294901760
    %v1310 = vsub.f32 %v649, %v1309
    %v1311 = vand.u32 %v1310, 4294901760
    %1312 = vmatprep.mubr.f32.mxu0 %v1311
    %v1313 = vand.u32 %v648, 4294901760
    %v1314 = vsub.f32 %v648, %v1313
    %v1315 = vand.u32 %v1314, 4294901760
    %1316 = vmatmul.mubr.f32.gmra.mrb[0].mxu0 %v1315
    %v1317 = vpop.f32.mrb[0].mxu0
    %v1318 = vadd.f32 %v1199, %v1317
    %v1319 = vpop.f32.mrb[0].mxu0
    %1320 = vdwg.mxu0
    %1321 = vmatprep.subr.mxu0 0.0
    %v1322 = vand.u32 %v650, 4294901760
    %v1323 = vsub.f32 %v650, %v1322
    %v1324 = vand.u32 %v1323, 4294901760
    %1325 = vmatpush1.msra.mxu0 %v1324
    %1326 = vmatprep.subr.mxu0 0.0
    %v1327 = vand.u32 %v651, 4294901760
    %v1328 = vsub.f32 %v651, %v1327
    %v1329 = vand.u32 %v1328, 4294901760
    %1330 = vmatpush1.msra.mxu0 %v1329
    %1331 = vmatprep.subr.mxu0 0.0
    %v1332 = vand.u32 %v652, 4294901760
    %v1333 = vsub.f32 %v652, %v1332
    %v1334 = vand.u32 %v1333, 4294901760
    %1335 = vmatpush1.msra.mxu0 %v1334
    %1336 = vmatprep.subr.mxu0 0.0
    %v1337 = vand.u32 %v653, 4294901760
    %v1338 = vsub.f32 %v653, %v1337
    %v1339 = vand.u32 %v1338, 4294901760
    %1340 = vmatpush1.msra.mxu0 %v1339
    %1341 = vmatprep.subr.mxu0 0.0
    %v1342 = vand.u32 %v654, 4294901760
    %v1343 = vsub.f32 %v654, %v1342
    %v1344 = vand.u32 %v1343, 4294901760
    %1345 = vmatpush1.msra.mxu0 %v1344
    %1346 = vmatprep.subr.mxu0 0.0
    %v1347 = vand.u32 %v655, 4294901760
    %v1348 = vsub.f32 %v655, %v1347
    %v1349 = vand.u32 %v1348, 4294901760
    %1350 = vmatpush1.msra.mxu0 %v1349
    %1351 = vmatprep.subr.mxu0 0.0
    %v1352 = vand.u32 %v656, 4294901760
    %v1353 = vsub.f32 %v656, %v1352
    %v1354 = vand.u32 %v1353, 4294901760
    %1355 = vmatpush1.msra.mxu0 %v1354
    %1356 = vmatprep.subr.mxu0 0.0
    %v1357 = vand.u32 %v657, 4294901760
    %v1358 = vsub.f32 %v657, %v1357
    %v1359 = vand.u32 %v1358, 4294901760
    %1360 = vmatpush1.msra.mxu0 %v1359
    %1361 = vmatprep.subr.mxu0 0.0
    %v1362 = vand.u32 %v658, 4294901760
    %v1363 = vsub.f32 %v658, %v1362
    %v1364 = vand.u32 %v1363, 4294901760
    %1365 = vmatpush1.msra.mxu0 %v1364
    %1366 = vmatprep.subr.mxu0 0.0
    %v1367 = vand.u32 %v659, 4294901760
    %v1368 = vsub.f32 %v659, %v1367
    %v1369 = vand.u32 %v1368, 4294901760
    %1370 = vmatpush1.msra.mxu0 %v1369
    %1371 = vmatprep.subr.mxu0 0.0
    %v1372 = vand.u32 %v660, 4294901760
    %v1373 = vsub.f32 %v660, %v1372
    %v1374 = vand.u32 %v1373, 4294901760
    %1375 = vmatpush1.msra.mxu0 %v1374
    %1376 = vmatprep.subr.mxu0 0.0
    %v1377 = vand.u32 %v661, 4294901760
    %v1378 = vsub.f32 %v661, %v1377
    %v1379 = vand.u32 %v1378, 4294901760
    %1380 = vmatpush1.msra.mxu0 %v1379
    %1381 = vmatprep.subr.mxu0 0.0
    %v1382 = vand.u32 %v662, 4294901760
    %v1383 = vsub.f32 %v662, %v1382
    %v1384 = vand.u32 %v1383, 4294901760
    %1385 = vmatpush1.msra.mxu0 %v1384
    %1386 = vmatprep.subr.mxu0 0.0
    %v1387 = vand.u32 %v663, 4294901760
    %v1388 = vsub.f32 %v663, %v1387
    %v1389 = vand.u32 %v1388, 4294901760
    %1390 = vmatpush1.msra.mxu0 %v1389
    %1391 = vmatprep.subr.mxu0 0.0
    %v1392 = vand.u32 %v664, 4294901760
    %v1393 = vsub.f32 %v664, %v1392
    %v1394 = vand.u32 %v1393, 4294901760
    %1395 = vmatpush1.msra.mxu0 %v1394
    %1396 = vmatprep.subr.mxu0 0.0
    %v1397 = vand.u32 %v665, 4294901760
    %v1398 = vsub.f32 %v665, %v1397
    %v1399 = vand.u32 %v1398, 4294901760
    %1400 = vmatpush1.msra.mxu0 %v1399
    %1401 = vmatprep.subr.mxu0 0.0
    %v1402 = vand.u32 %v666, 4294901760
    %v1403 = vsub.f32 %v666, %v1402
    %v1404 = vand.u32 %v1403, 4294901760
    %1405 = vmatpush1.msra.mxu0 %v1404
    %1406 = vmatprep.subr.mxu0 0.0
    %v1407 = vand.u32 %v667, 4294901760
    %v1408 = vsub.f32 %v667, %v1407
    %v1409 = vand.u32 %v1408, 4294901760
    %1410 = vmatpush1.msra.mxu0 %v1409
    %1411 = vmatprep.subr.mxu0 0.0
    %v1412 = vand.u32 %v668, 4294901760
    %v1413 = vsub.f32 %v668, %v1412
    %v1414 = vand.u32 %v1413, 4294901760
    %1415 = vmatpush1.msra.mxu0 %v1414
    %1416 = vmatprep.subr.mxu0 0.0
    %v1417 = vand.u32 %v669, 4294901760
    %v1418 = vsub.f32 %v669, %v1417
    %v1419 = vand.u32 %v1418, 4294901760
    %1420 = vmatpush1.msra.mxu0 %v1419
    %1421 = vmatprep.subr.mxu0 0.0
    %v1422 = vand.u32 %v670, 4294901760
    %v1423 = vsub.f32 %v670, %v1422
    %v1424 = vand.u32 %v1423, 4294901760
    %1425 = vmatpush1.msra.mxu0 %v1424
    %1426 = vmatprep.subr.mxu0 0.0
    %v1427 = vand.u32 %v671, 4294901760
    %v1428 = vsub.f32 %v671, %v1427
    %v1429 = vand.u32 %v1428, 4294901760
    %1430 = vmatpush1.msra.mxu0 %v1429
    %1431 = vmatprep.subr.mxu0 0.0
    %v1432 = vand.u32 %v672, 4294901760
    %v1433 = vsub.f32 %v672, %v1432
    %v1434 = vand.u32 %v1433, 4294901760
    %1435 = vmatpush1.msra.mxu0 %v1434
    %1436 = vmatprep.subr.mxu0 0.0
    %v1437 = vand.u32 %v673, 4294901760
    %v1438 = vsub.f32 %v673, %v1437
    %v1439 = vand.u32 %v1438, 4294901760
    %1440 = vmatpush1.msra.mxu0 %v1439
    %1441 = vmatprep.subr.mxu0 0.0
    %v1442 = vand.u32 %v674, 4294901760
    %v1443 = vsub.f32 %v674, %v1442
    %v1444 = vand.u32 %v1443, 4294901760
    %1445 = vmatpush1.msra.mxu0 %v1444
    %1446 = vmatprep.subr.mxu0 0.0
    %v1447 = vand.u32 %v675, 4294901760
    %v1448 = vsub.f32 %v675, %v1447
    %v1449 = vand.u32 %v1448, 4294901760
    %1450 = vmatpush1.msra.mxu0 %v1449
    %1451 = vmatprep.subr.mxu0 0.0
    %v1452 = vand.u32 %v676, 4294901760
    %v1453 = vsub.f32 %v676, %v1452
    %v1454 = vand.u32 %v1453, 4294901760
    %1455 = vmatpush1.msra.mxu0 %v1454
    %1456 = vmatprep.subr.mxu0 0.0
    %v1457 = vand.u32 %v677, 4294901760
    %v1458 = vsub.f32 %v677, %v1457
    %v1459 = vand.u32 %v1458, 4294901760
    %1460 = vmatpush1.msra.mxu0 %v1459
    %1461 = vmatprep.subr.mxu0 0.0
    %v1462 = vand.u32 %v678, 4294901760
    %v1463 = vsub.f32 %v678, %v1462
    %v1464 = vand.u32 %v1463, 4294901760
    %1465 = vmatpush1.msra.mxu0 %v1464
    %1466 = vmatprep.subr.mxu0 0.0
    %v1467 = vand.u32 %v679, 4294901760
    %v1468 = vsub.f32 %v679, %v1467
    %v1469 = vand.u32 %v1468, 4294901760
    %1470 = vmatpush1.msra.mxu0 %v1469
    %1471 = vmatprep.subr.mxu0 0.0
    %v1472 = vand.u32 %v680, 4294901760
    %v1473 = vsub.f32 %v680, %v1472
    %v1474 = vand.u32 %v1473, 4294901760
    %1475 = vmatpush1.msra.mxu0 %v1474
    %1476 = vmatprep.subr.mxu0 0.0
    %v1477 = vand.u32 %v681, 4294901760
    %v1478 = vsub.f32 %v681, %v1477
    %v1479 = vand.u32 %v1478, 4294901760
    %1480 = vmatpush1.msra.mxu0 %v1479
    %v1481 = vand.u32 %v647, 4294901760
    %1482 = vmatprep.mubr.f32.mxu0 %v1481
    %v1483 = vand.u32 %v646, 4294901760
    %1484 = vmatmul.mubr.f32.gmra.mrb[0].mxu0 %v1483
    %v1485 = vpop.f32.mrb[0].mxu0
    %v1486 = vadd.f32 %v1307, %v1485
    %v1487 = vpop.f32.mrb[0].mxu0
    %v1488 = vand.u32 %v649, 4294901760
    %1489 = vmatprep.mubr.f32.mxu0 %v1488
    %v1490 = vand.u32 %v648, 4294901760
    %1491 = vmatmul.mubr.f32.gmra.mrb[0].mxu0 %v1490
    %v1492 = vpop.f32.mrb[0].mxu0
    %v1493 = vadd.f32 %v1318, %v1492
    %v1494 = vpop.f32.mrb[0].mxu0
    %1495 = vdwg.mxu0
    %1496 = vmatprep.subr.mxu0 0.0
    %v1497 = vand.u32 %v650, 4294901760
    %1498 = vmatpush1.msra.mxu0 %v1497
    %1499 = vmatprep.subr.mxu0 0.0
    %v1500 = vand.u32 %v651, 4294901760
    %1501 = vmatpush1.msra.mxu0 %v1500
    %1502 = vmatprep.subr.mxu0 0.0
    %v1503 = vand.u32 %v652, 4294901760
    %1504 = vmatpush1.msra.mxu0 %v1503
    %1505 = vmatprep.subr.mxu0 0.0
    %v1506 = vand.u32 %v653, 4294901760
    %1507 = vmatpush1.msra.mxu0 %v1506
    %1508 = vmatprep.subr.mxu0 0.0
    %v1509 = vand.u32 %v654, 4294901760
    %1510 = vmatpush1.msra.mxu0 %v1509
    %1511 = vmatprep.subr.mxu0 0.0
    %v1512 = vand.u32 %v655, 4294901760
    %1513 = vmatpush1.msra.mxu0 %v1512
    %1514 = vmatprep.subr.mxu0 0.0
    %v1515 = vand.u32 %v656, 4294901760
    %1516 = vmatpush1.msra.mxu0 %v1515
    %1517 = vmatprep.subr.mxu0 0.0
    %v1518 = vand.u32 %v657, 4294901760
    %1519 = vmatpush1.msra.mxu0 %v1518
    %1520 = vmatprep.subr.mxu0 0.0
    %v1521 = vand.u32 %v658, 4294901760
    %1522 = vmatpush1.msra.mxu0 %v1521
    %1523 = vmatprep.subr.mxu0 0.0
    %v1524 = vand.u32 %v659, 4294901760
    %1525 = vmatpush1.msra.mxu0 %v1524
    %1526 = vmatprep.subr.mxu0 0.0
    %v1527 = vand.u32 %v660, 4294901760
    %1528 = vmatpush1.msra.mxu0 %v1527
    %1529 = vmatprep.subr.mxu0 0.0
    %v1530 = vand.u32 %v661, 4294901760
    %1531 = vmatpush1.msra.mxu0 %v1530
    %1532 = vmatprep.subr.mxu0 0.0
    %v1533 = vand.u32 %v662, 4294901760
    %1534 = vmatpush1.msra.mxu0 %v1533
    %1535 = vmatprep.subr.mxu0 0.0
    %v1536 = vand.u32 %v663, 4294901760
    %1537 = vmatpush1.msra.mxu0 %v1536
    %1538 = vmatprep.subr.mxu0 0.0
    %v1539 = vand.u32 %v664, 4294901760
    %1540 = vmatpush1.msra.mxu0 %v1539
    %1541 = vmatprep.subr.mxu0 0.0
    %v1542 = vand.u32 %v665, 4294901760
    %1543 = vmatpush1.msra.mxu0 %v1542
    %1544 = vmatprep.subr.mxu0 0.0
    %v1545 = vand.u32 %v666, 4294901760
    %1546 = vmatpush1.msra.mxu0 %v1545
    %1547 = vmatprep.subr.mxu0 0.0
    %v1548 = vand.u32 %v667, 4294901760
    %1549 = vmatpush1.msra.mxu0 %v1548
    %1550 = vmatprep.subr.mxu0 0.0
    %v1551 = vand.u32 %v668, 4294901760
    %1552 = vmatpush1.msra.mxu0 %v1551
    %1553 = vmatprep.subr.mxu0 0.0
    %v1554 = vand.u32 %v669, 4294901760
    %1555 = vmatpush1.msra.mxu0 %v1554
    %1556 = vmatprep.subr.mxu0 0.0
    %v1557 = vand.u32 %v670, 4294901760
    %1558 = vmatpush1.msra.mxu0 %v1557
    %1559 = vmatprep.subr.mxu0 0.0
    %v1560 = vand.u32 %v671, 4294901760
    %1561 = vmatpush1.msra.mxu0 %v1560
    %1562 = vmatprep.subr.mxu0 0.0
    %v1563 = vand.u32 %v672, 4294901760
    %1564 = vmatpush1.msra.mxu0 %v1563
    %1565 = vmatprep.subr.mxu0 0.0
    %v1566 = vand.u32 %v673, 4294901760
    %1567 = vmatpush1.msra.mxu0 %v1566
    %1568 = vmatprep.subr.mxu0 0.0
    %v1569 = vand.u32 %v674, 4294901760
    %1570 = vmatpush1.msra.mxu0 %v1569
    %1571 = vmatprep.subr.mxu0 0.0
    %v1572 = vand.u32 %v675, 4294901760
    %1573 = vmatpush1.msra.mxu0 %v1572
    %1574 = vmatprep.subr.mxu0 0.0
    %v1575 = vand.u32 %v676, 4294901760
    %1576 = vmatpush1.msra.mxu0 %v1575
    %1577 = vmatprep.subr.mxu0 0.0
    %v1578 = vand.u32 %v677, 4294901760
    %1579 = vmatpush1.msra.mxu0 %v1578
    %1580 = vmatprep.subr.mxu0 0.0
    %v1581 = vand.u32 %v678, 4294901760
    %1582 = vmatpush1.msra.mxu0 %v1581
    %1583 = vmatprep.subr.mxu0 0.0
    %v1584 = vand.u32 %v679, 4294901760
    %1585 = vmatpush1.msra.mxu0 %v1584
    %1586 = vmatprep.subr.mxu0 0.0
    %v1587 = vand.u32 %v680, 4294901760
    %1588 = vmatpush1.msra.mxu0 %v1587
    %1589 = vmatprep.subr.mxu0 0.0
    %v1590 = vand.u32 %v681, 4294901760
    %1591 = vmatpush1.msra.mxu0 %v1590
    %v1592 = vand.u32 %v647, 4294901760
    %1593 = vmatprep.mubr.f32.mxu0 %v1592
    %v1594 = vand.u32 %v646, 4294901760
    %1595 = vmatmul.mubr.f32.gmra.mrb[0].mxu0 %v1594
    %v1596 = vpop.f32.mrb[0].mxu0
    %v1597 = vadd.f32 %v1486, %v1596
    %v1598 = vpop.f32.mrb[0].mxu0
    %v1599 = vand.u32 %v649, 4294901760
    %1600 = vmatprep.mubr.f32.mxu0 %v1599
    %v1601 = vand.u32 %v648, 4294901760
    %1602 = vmatmul.mubr.f32.gmra.mrb[0].mxu0 %v1601
    %v1603 = vpop.f32.mrb[0].mxu0
    %v1604 = vadd.f32 %v1493, %v1603
    %v1605 = vpop.f32.mrb[0].mxu0
    %1606 = vdwg.mxu0
    %vm1607 = vcmask 130048
    %1608 = vst.msk [vmem:[#allocation2] sm:$0xff] %vm1607, %v1597
    %1609 = vst.msk [vmem:[#allocation2 + $0x8] sm:$0xff] %vm1607, %v1604
    // Predicated region
    $region22: #{regression_forward.1} parent=1 // pred_check
      _
    $region23: #{regression_forward.1} parent=1 // pred_check_branch
      %1611 = sbr.rel (0) target = $region25
    $region24: #{regression_forward.1} parent=1 // pred_region
      %s1613 = ssub.s32 256, 256
      %1614 = vsyncadd [#allocation3], %s1613
      %s1615 = sshll.u32 [#allocation2], 4
      %s1616 = int_to_ptr.vmem [resolvable:$true] %s1615
      %1621 = dma.vmem_to_hbm [thread:$0]  %s1616, 256, %s5, [#allocation3], 128, 128, 8
    $region25: #{regression_forward.1} parent=1 // pred_fallthru
      _
    // Predicated region
    $region26: #{regression_forward.1} parent=1 // pred_check
      _
    $region27: #{regression_forward.1} parent=1 // pred_check_branch
      %1623 = sbr.rel (0) target = $region29
    $region28: #{regression_forward.1} parent=1 // pred_region
      %1624 = dma.done [#allocation3], 256
    $region29: #{regression_forward.1} parent=1 // pred_fallthru
      _
    %1625 = vsyncpa [#allocation3], 1

</llo_original>
